<compile_context>
chip_gen: v7x
topology: tpu7x:2x2x1
jax: 0.10.0
libtpu: 0.0.40
codegen_flags: <defaults>
</compile_context>

<pallas_src>
import functools

import numpy as np
import jax
import jax.numpy as jnp
from jax.experimental import pallas as pl
from jax.experimental.pallas import tpu as pltpu

BN_EPS = 1e-3
HIGHEST = jax.lax.Precision.HIGHEST

_MAT_KEYS = ('bd1', 'sv', 'mh', 'bdp')   # MXU operands (cast to bf16 on the fast path)


# ---------------------------------------------------------------------------
# Folded forward math (shared by the Pallas kernel and the pure-JAX mirror).
# ---------------------------------------------------------------------------
def _folded_compute(x, bd1, sv, mh, bdp, vecs, *, precision=None):
    """SBmodule forward in the folded, lane-dense formulation.

    x    : (H, W*C) f32 activation slab (lane index L = w*C + c).
    bd1  : (W*C, W*Cm)  block-diag: grouped 1x1 conv + channel_shuffle + branch duplication.
    sv   : (K, H, H)    row-shift matrices (zero boundaries) for the vertical depthwise taps.
    mh   : (W*Cm, W*Cm) banded: horizontal depthwise conv (all taps, boundaries, B_h scale).
    bdp  : (W*Cm, W*C)  block-diag: both branches' 1x1 convs + bno scale + channel concat.
    vecs : (K+6, W*C) f32 rows: [0:K) vertical tap weights (B_v scale folded, lane-tiled),
           then bias(B_v+B_h), PReLU alpha(mid), bno shift, BR scale, BR shift, BR alpha.
    bd1/sv/mh/bdp may be Pallas Refs (in-kernel) or jnp arrays (reference); matmul operands
    are consumed in their own dtype (bf16 fast path -> single MXU pass, f32 accumulation).
    """
    mdt = bd1.dtype
    k = sv.shape[0]
    vv = vecs[...]                                        # (K+6, W*C), small
    y = jnp.dot(x.astype(mdt), bd1[...], precision=precision,
                preferred_element_type=jnp.float32)       # c1 + shuffle + duplicate
    yc = y.astype(mdt)
    ov = None
    for j in range(k):                                    # vertical depthwise: shift-matmuls
        t = jnp.dot(sv[j], yc, precision=precision,
                    preferred_element_type=jnp.float32) * vv[j]
        ov = t if ov is None else ov + t
    oh = jnp.dot(yc, mh[...], precision=precision,
                 preferred_element_type=jnp.float32)      # horizontal depthwise, one matmul
    o = ov + oh + vv[k]                                   # B_v(.) + B_h(.) (shifts here)
    o = jnp.where(o >= 0, o, o * vv[k + 1])               # PReLU over the fused mid channels
    z = jnp.dot(o.astype(mdt), bdp[...], precision=precision,
                preferred_element_type=jnp.float32)       # both 1x1 convs * bno scale (concat = disjoint cols)
    z = z + vv[k + 2] + x                                 # bno shift + residual add
    out = z * vv[k + 3] + vv[k + 4]                       # BR: BatchNorm
    return jnp.where(out >= 0, out, out * vv[k + 5])      # BR: PReLU


def _sbmodule_kernel(x_ref, bd1_ref, sv_ref, mh_ref, bdp_ref, vecs_ref, out_ref, *,
                     precision):
    out = _folded_compute(x_ref[0], bd1_ref, sv_ref, mh_ref, bdp_ref, vecs_ref,
                          precision=precision)
    out_ref[0] = out.astype(out_ref.dtype)


def sbmodule_pallas(x, kparams, *, precision=None):
    """x: (B, H, W, C) NHWC.  One grid step per batch image ("parallel" -> both v7x cores)."""
    B, H, W, C = x.shape
    WC = W * C
    x2 = x.reshape(B, H, WC)                              # lane-dense I/O slabs
    params = [kparams[kk] for kk in ('bd1', 'sv', 'mh', 'bdp', 'vecs')]

    def whole(a):                                         # full-array block, constant index
        nd = a.ndim
        return pl.BlockSpec(a.shape, lambda b, _nd=nd: (0,) * _nd)

    out2 = pl.pallas_call(
        functools.partial(_sbmodule_kernel, precision=precision),
        out_shape=jax.ShapeDtypeStruct((B, H, WC), x.dtype),
        grid_spec=pltpu.PrefetchScalarGridSpec(
            num_scalar_prefetch=0,
            grid=(B,),
            # NOTE: at realistic SINet resolutions, tile H here with a 2-row halo for the
            # vertical taps instead of whole-frame blocks, sized against the VMEM limit.
            in_specs=[pl.BlockSpec((1, H, WC), lambda b: (b, 0, 0))] +
                     [whole(a) for a in params],
            out_specs=pl.BlockSpec((1, H, WC), lambda b: (b, 0, 0)),
        ),
        compiler_params=pltpu.CompilerParams(
            dimension_semantics=("parallel",)),
    )(x2, *params)
    return out2.reshape(B, H, W, C)


# ---------------------------------------------------------------------------
# Synthetic parameters (deterministic), BN folded to eval-mode scale/shift.
# ---------------------------------------------------------------------------
def make_raw_params(key, nIn, nOut, config):
    group_n = len(config)
    n = nOut // group_n
    n1 = nOut - group_n * n
    assert n1 == 0, "folded kernel assumes nOut divisible by len(config)"
    it = iter(jax.random.split(key, 64))

    def normal(shape, scale=0.3):
        return scale * jax.random.normal(next(it), shape, jnp.float32)

    def bn_fold(c):
        gamma = 1.0 + 0.1 * jax.random.normal(next(it), (c,), jnp.float32)
        beta = 0.1 * jax.random.normal(next(it), (c,), jnp.float32)
        mean = 0.1 * jax.random.normal(next(it), (c,), jnp.float32)
        var = jax.random.uniform(next(it), (c,), jnp.float32, minval=0.5, maxval=1.5)
        scale = gamma / jnp.sqrt(var + BN_EPS)
        shift = beta - mean * scale
        return scale, shift

    # c1: Conv2d(nIn, n, 1, groups=group_n), folded to dense (nIn, n) incl. channel_shuffle.
    cin_g = nIn // group_n
    cout_g = n // group_n
    w_c1 = normal((n, cin_g))
    w_full = jnp.zeros((nIn, n), jnp.float32)
    for g in range(group_n):
        w_full = w_full.at[g * cin_g:(g + 1) * cin_g,
                           g * cout_g:(g + 1) * cout_g].set(
            w_c1[g * cout_g:(g + 1) * cout_g, :].T)
    perm = np.arange(n).reshape(group_n, n // group_n).T.reshape(-1)
    w1 = w_full[:, perm]

    branches = []
    for i, (k, _avg) in enumerate(config):            # avgsize == 1 -> SB branch, no down/up
        n_out_i = n + n1 if i == 0 else n
        wv = normal((k, n))                            # wv[j, c] = torch vertical  w[c, 0, j, 0]
        wh = normal((k, n))                            # wh[j, c] = torch horizontal w[c, 0, 0, j]
        sv, bv = bn_fold(n)
        sh, bh = bn_fold(n)
        so, bo = bn_fold(n_out_i)
        branches.append(dict(
            k=k, wv=wv, wh=wh, sv=sv, bv=bv, sh=sh, bh=bh,
            alpha=jnp.full((n,), 0.25, jnp.float32),
            wp=normal((n, n_out_i)),                   # wp[i, o] = torch 1x1 w[o, i]
            bno_s=so, bno_b=bo))
    sbr, bbr = bn_fold(nOut)
    return dict(nIn=nIn, nOut=nOut, w1=w1, branches=branches,
                br_s=sbr, br_b=bbr, br_a=jnp.full((nOut,), 0.25, jnp.float32))


def fold_params(raw, H, W):
    """Fold everything into the lane-dense matrices/vectors consumed by the kernel."""
    branches = raw['branches']
    n = int(np.asarray(branches[0]['wv']).shape[1])
    Cm = n * len(branches)
    Cin = int(np.asarray(raw['w1']).shape[0])
    Cout = int(raw['nOut'])
    assert Cin == Cm == Cout, "residual/lane layout needs nIn == nOut == group_n * n"
    KMAX = max(br['k'] for br in branches)
    c0 = (KMAX - 1) // 2

    # c1 + channel_shuffle + duplication to both branches -> block-diagonal matmul.
    w1s = np.concatenate([np.asarray(raw['w1'], np.float32)] * len(branches), axis=1)  # (Cin, Cm)
    bd1 = np.kron(np.eye(W, dtype=np.float32), w1s)                                    # (W*Cin, W*Cm)

    # Depthwise taps stacked across branches (k=3 padded to KMAX), BN scales folded in.
    wv_all = np.zeros((KMAX, Cm), np.float32)
    wh_all = np.zeros((KMAX, Cm), np.float32)
    bias_vh = np.zeros((Cm,), np.float32)
    alpha_mid = np.zeros((Cm,), np.float32)
    for i, br in enumerate(branches):
        k = br['k']
        p = (k - 1) // 2
        sl = slice(i * n, (i + 1) * n)
        wv_all[c0 - p:c0 + p + 1, sl] = np.asarray(br['wv']) * np.asarray(br['sv'])
        wh_all[c0 - p:c0 + p + 1, sl] = np.asarray(br['wh']) * np.asarray(br['sh'])
        bias_vh[sl] = np.asarray(br['bv']) + np.asarray(br['bh'])
        alpha_mid[sl] = np.asarray(br['alpha'])

    # Vertical: row-shift matrices (zero boundaries) + lane-tiled per-tap weights.
    sv_mats = np.stack([np.eye(H, H, k=j - c0, dtype=np.float32) for j in range(KMAX)])
    wvl = np.tile(wv_all, (1, W))                                                      # (KMAX, W*Cm)

    # Horizontal: one banded matrix covering all taps + boundaries + B_h scale.
    mh = np.zeros((W * Cm, W * Cm), np.float32)
    for j in range(KMAX):
        d = j - c0
        mh += np.kron(np.eye(W, W, k=-d, dtype=np.float32), np.diag(wh_all[j]))

    # Both branches' 1x1 convs * trailing-BN scale + channel concat -> block-diag matmul.
    wp_cat = np.zeros((Cm, Cout), np.float32)
    col = 0
    for i, br in enumerate(branches):
        wp = np.asarray(br['wp'], np.float32) * np.asarray(br['bno_s'], np.float32)[None, :]
        wp_cat[i * n:(i + 1) * n, col:col + wp.shape[1]] = wp
        col += wp.shape[1]
    bdp = np.kron(np.eye(W, dtype=np.float32), wp_cat)                                 # (W*Cm, W*Cout)

    bno_b = np.concatenate([np.asarray(br['bno_b']) for br in branches])

    def tile_lane(v):                                    # (C,) -> (W*C,) matching L = w*C + c
        return np.tile(np.asarray(v, np.float32), W)

    vecs = np.stack(list(wvl) + [tile_lane(bias_vh), tile_lane(alpha_mid),
                                 tile_lane(bno_b),
                                 tile_lane(raw['br_s']), tile_lane(raw['br_b']),
                                 tile_lane(raw['br_a'])])
    assert vecs.shape[0] == KMAX + 6
    return {'bd1': jnp.asarray(bd1), 'sv': jnp.asarray(sv_mats),
            'mh': jnp.asarray(mh), 'bdp': jnp.asarray(bdp),
            'vecs': jnp.asarray(vecs)}


def make_kernel_params(fold, matmul_dtype=jnp.bfloat16):
    """bf16 MXU operands (single-pass matmuls); per-lane vectors stay f32."""
    return {kk: (v.astype(matmul_dtype) if kk in _MAT_KEYS else v)
            for kk, v in fold.items()}


# ---------------------------------------------------------------------------
# References.
# ---------------------------------------------------------------------------
def folded_reference(x, fold, *, matmul_dtype=jnp.float32, precision=None):
    """Pure-JAX mirror of the kernel math (same folded operands / dtypes)."""
    B, H, W, C = x.shape
    x2 = x.reshape(B, H, W * C)
    p = make_kernel_params(fold, matmul_dtype)
    f = lambda xb: _folded_compute(xb, p['bd1'], p['sv'], p['mh'], p['bdp'],
                                   p['vecs'], precision=precision)
    return jax.vmap(f)(x2).reshape(B, H, W, C)


def direct_reference(x, raw):
    """Straightforward (unfused) NHWC implementation of SBmodule, f32 HIGHEST."""
    B, H, W, C = x.shape
    y = jnp.einsum('bhwi,io->bhwo', x, raw['w1'], precision=HIGHEST)  # c1 + shuffle
    outs = []
    for br in raw['branches']:
        k = br['k']
        p = (k - 1) // 2
        yv = jnp.pad(y, ((0, 0), (p, p), (0, 0), (0, 0)))
        ov = sum(yv[:, j:j + H, :, :] * br['wv'][j] for j in range(k))
        yh = jnp.pad(y, ((0, 0), (0, 0), (p, p), (0, 0)))
        oh = sum(yh[:, :, j:j + W, :] * br['wh'][j] for j in range(k))
        o = (ov * br['sv'] + br['bv']) + (oh * br['sh'] + br['bh'])
        o = jnp.where(o >= 0, o, o * br['alpha'])
        z = jnp.einsum('bhwi,io->bhwo', o, br['wp'], precision=HIGHEST)
        outs.append(z * br['bno_s'] + br['bno_b'])
    comb = jnp.concatenate(outs, axis=-1) + x
    out = comb * raw['br_s'] + raw['br_b']
    return jnp.where(out >= 0, out, out * raw['br_a'])


if __name__ == "__main__":
    nIn = nOut = 16
    B, H, W = 2, 16, 16
    config = [[3, 1], [5, 1]]

    key = jax.random.PRNGKey(0)
    kx, kp = jax.random.split(key)
    x = jax.random.normal(kx, (B, H, W, nIn), jnp.float32)            # NHWC
    raw = make_raw_params(kp, nIn, nOut, config)
    fold = fold_params(raw, H, W)

    # Fast path: bf16 matmul operands, single MXU pass, f32 accumulate / elementwise.
    out = jax.block_until_ready(sbmodule_pallas(x, make_kernel_params(fold)))

    # (a) Exact mode of the same kernel (f32 operands + HIGHEST) vs. the unfused reference:
    #     tight check of the full Pallas path and of all host-side folding.
    out_exact = jax.block_until_ready(
        sbmodule_pallas(x, fold, precision=HIGHEST))
    ref = direct_reference(x, raw)
    np.testing.assert_allclose(np.asarray(out_exact), np.asarray(ref),
                               rtol=1e-4, atol=1e-4)

    # (b) Fast path vs. the identical bf16 math run through plain XLA.  Tolerance covers
    #     possible f32-accumulation-order / bf16 cast-boundary differences between the
    #     Mosaic and XLA lowerings of the same bf16 dots.
    ref_bf16 = folded_reference(x, fold, matmul_dtype=jnp.bfloat16)
    np.testing.assert_allclose(np.asarray(out), np.asarray(ref_bf16),
                               rtol=3e-2, atol=3e-2)

    print("KERNEL_OK")
</pallas_src>

<mosaic_0001>
module attributes {stable_mosaic.version = 11 : i64} {
  func.func @_sbmodule_kernel(%arg0: i32, %arg1: memref<1x16x256xf32, #tpu.memory_space<vmem>>, %arg2: memref<256x256xbf16, #tpu.memory_space<vmem>>, %arg3: memref<5x16x16xbf16, #tpu.memory_space<vmem>>, %arg4: memref<256x256xbf16, #tpu.memory_space<vmem>>, %arg5: memref<256x256xbf16, #tpu.memory_space<vmem>>, %arg6: memref<11x256xf32, #tpu.memory_space<vmem>>, %arg7: memref<1x16x256xf32, #tpu.memory_space<vmem>>) attributes {dimension_semantics = [#tpu.dimension_semantics<parallel>], iteration_bounds = array<i64: 2>, scalar_prefetch = 0 : i64, scratch_operands = 0 : i64, tpu.core_type = #tpu.core_type<tc>, window_params = [{transform_indices = @transform_0, window_bounds = array<i64: 1, 16, 256>}, {pipeline_mode = #tpu.pipeline_mode<synchronous>, transform_indices = @transform_1, window_bounds = array<i64: 256, 256>}, {pipeline_mode = #tpu.pipeline_mode<synchronous>, transform_indices = @transform_2, window_bounds = array<i64: 5, 16, 16>}, {pipeline_mode = #tpu.pipeline_mode<synchronous>, transform_indices = @transform_3, window_bounds = array<i64: 256, 256>}, {pipeline_mode = #tpu.pipeline_mode<synchronous>, transform_indices = @transform_4, window_bounds = array<i64: 256, 256>}, {pipeline_mode = #tpu.pipeline_mode<synchronous>, transform_indices = @transform_5, window_bounds = array<i64: 11, 256>}, {transform_indices = @transform_6, window_bounds = array<i64: 1, 16, 256>}]} {
    %c0 = arith.constant 0 : index
    %c0_0 = arith.constant 0 : index
    %c0_1 = arith.constant 0 : index
    %0 = vector.load %arg1[%c0, %c0_0, %c0_1] : memref<1x16x256xf32, #tpu.memory_space<vmem>>, vector<1x16x256xf32>
    %1 = vector.shape_cast %0 : vector<1x16x256xf32> to vector<16x256xf32>
    %c0_2 = arith.constant 0 : index
    %c0_3 = arith.constant 0 : index
    %2 = vector.load %arg6[%c0_2, %c0_3] : memref<11x256xf32, #tpu.memory_space<vmem>>, vector<11x256xf32>
    %3 = arith.truncf %1 : vector<16x256xf32> to vector<16x256xbf16>
    %c0_4 = arith.constant 0 : index
    %c0_5 = arith.constant 0 : index
    %4 = vector.load %arg2[%c0_4, %c0_5] : memref<256x256xbf16, #tpu.memory_space<vmem>>, vector<256x256xbf16>
    %cst = arith.constant dense<0.000000e+00> : vector<16x256xf32>
    %5 = tpu.matmul %3, %4, %cst {dimension_numbers = #tpu.dot_dimension_numbers<[1], [0], [0], [1], [0, 0, 1, 1], [], []>} : vector<16x256xbf16>, vector<256x256xbf16>, vector<16x256xf32> -> vector<16x256xf32>
    %6 = arith.truncf %5 : vector<16x256xf32> to vector<16x256xbf16>
    %c0_6 = arith.constant 0 : index
    %c0_7 = arith.constant 0 : index
    %c0_8 = arith.constant 0 : index
    %7 = vector.load %arg3[%c0_6, %c0_7, %c0_8] : memref<5x16x16xbf16, #tpu.memory_space<vmem>>, vector<1x16x16xbf16>
    %8 = vector.shape_cast %7 : vector<1x16x16xbf16> to vector<16x16xbf16>
    %cst_9 = arith.constant dense<0.000000e+00> : vector<16x256xf32>
    %9 = tpu.matmul %8, %6, %cst_9 {dimension_numbers = #tpu.dot_dimension_numbers<[1], [0], [0], [1], [0, 0, 1, 1], [], []>} : vector<16x16xbf16>, vector<16x256xbf16>, vector<16x256xf32> -> vector<16x256xf32>
    %10 = vector.extract_strided_slice %2 {offsets = [0, 0], sizes = [1, 256], strides = [1, 1]} : vector<11x256xf32> to vector<1x256xf32>
    %11 = vector.shape_cast %10 : vector<1x256xf32> to vector<256xf32>
    %12 = vector.shape_cast %11 : vector<256xf32> to vector<1x256xf32>
    %13 = vector.broadcast %12 : vector<1x256xf32> to vector<16x256xf32>
    %14 = arith.mulf %9, %13 : vector<16x256xf32>
    %c1 = arith.constant 1 : index
    %c0_10 = arith.constant 0 : index
    %c0_11 = arith.constant 0 : index
    %15 = vector.load %arg3[%c1, %c0_10, %c0_11] : memref<5x16x16xbf16, #tpu.memory_space<vmem>>, vector<1x16x16xbf16>
    %16 = vector.shape_cast %15 : vector<1x16x16xbf16> to vector<16x16xbf16>
    %cst_12 = arith.constant dense<0.000000e+00> : vector<16x256xf32>
    %17 = tpu.matmul %16, %6, %cst_12 {dimension_numbers = #tpu.dot_dimension_numbers<[1], [0], [0], [1], [0, 0, 1, 1], [], []>} : vector<16x16xbf16>, vector<16x256xbf16>, vector<16x256xf32> -> vector<16x256xf32>
    %18 = vector.extract_strided_slice %2 {offsets = [1, 0], sizes = [1, 256], strides = [1, 1]} : vector<11x256xf32> to vector<1x256xf32>
    %19 = vector.shape_cast %18 : vector<1x256xf32> to vector<256xf32>
    %20 = vector.shape_cast %19 : vector<256xf32> to vector<1x256xf32>
    %21 = vector.broadcast %20 : vector<1x256xf32> to vector<16x256xf32>
    %22 = arith.mulf %17, %21 : vector<16x256xf32>
    %23 = arith.addf %14, %22 : vector<16x256xf32>
    %c2 = arith.constant 2 : index
    %c0_13 = arith.constant 0 : index
    %c0_14 = arith.constant 0 : index
    %24 = vector.load %arg3[%c2, %c0_13, %c0_14] : memref<5x16x16xbf16, #tpu.memory_space<vmem>>, vector<1x16x16xbf16>
    %25 = vector.shape_cast %24 : vector<1x16x16xbf16> to vector<16x16xbf16>
    %cst_15 = arith.constant dense<0.000000e+00> : vector<16x256xf32>
    %26 = tpu.matmul %25, %6, %cst_15 {dimension_numbers = #tpu.dot_dimension_numbers<[1], [0], [0], [1], [0, 0, 1, 1], [], []>} : vector<16x16xbf16>, vector<16x256xbf16>, vector<16x256xf32> -> vector<16x256xf32>
    %27 = vector.extract_strided_slice %2 {offsets = [2, 0], sizes = [1, 256], strides = [1, 1]} : vector<11x256xf32> to vector<1x256xf32>
    %28 = vector.shape_cast %27 : vector<1x256xf32> to vector<256xf32>
    %29 = vector.shape_cast %28 : vector<256xf32> to vector<1x256xf32>
    %30 = vector.broadcast %29 : vector<1x256xf32> to vector<16x256xf32>
    %31 = arith.mulf %26, %30 : vector<16x256xf32>
    %32 = arith.addf %23, %31 : vector<16x256xf32>
    %c3 = arith.constant 3 : index
    %c0_16 = arith.constant 0 : index
    %c0_17 = arith.constant 0 : index
    %33 = vector.load %arg3[%c3, %c0_16, %c0_17] : memref<5x16x16xbf16, #tpu.memory_space<vmem>>, vector<1x16x16xbf16>
    %34 = vector.shape_cast %33 : vector<1x16x16xbf16> to vector<16x16xbf16>
    %cst_18 = arith.constant dense<0.000000e+00> : vector<16x256xf32>
    %35 = tpu.matmul %34, %6, %cst_18 {dimension_numbers = #tpu.dot_dimension_numbers<[1], [0], [0], [1], [0, 0, 1, 1], [], []>} : vector<16x16xbf16>, vector<16x256xbf16>, vector<16x256xf32> -> vector<16x256xf32>
    %36 = vector.extract_strided_slice %2 {offsets = [3, 0], sizes = [1, 256], strides = [1, 1]} : vector<11x256xf32> to vector<1x256xf32>
    %37 = vector.shape_cast %36 : vector<1x256xf32> to vector<256xf32>
    %38 = vector.shape_cast %37 : vector<256xf32> to vector<1x256xf32>
    %39 = vector.broadcast %38 : vector<1x256xf32> to vector<16x256xf32>
    %40 = arith.mulf %35, %39 : vector<16x256xf32>
    %41 = arith.addf %32, %40 : vector<16x256xf32>
    %c4 = arith.constant 4 : index
    %c0_19 = arith.constant 0 : index
    %c0_20 = arith.constant 0 : index
    %42 = vector.load %arg3[%c4, %c0_19, %c0_20] : memref<5x16x16xbf16, #tpu.memory_space<vmem>>, vector<1x16x16xbf16>
    %43 = vector.shape_cast %42 : vector<1x16x16xbf16> to vector<16x16xbf16>
    %cst_21 = arith.constant dense<0.000000e+00> : vector<16x256xf32>
    %44 = tpu.matmul %43, %6, %cst_21 {dimension_numbers = #tpu.dot_dimension_numbers<[1], [0], [0], [1], [0, 0, 1, 1], [], []>} : vector<16x16xbf16>, vector<16x256xbf16>, vector<16x256xf32> -> vector<16x256xf32>
    %45 = vector.extract_strided_slice %2 {offsets = [4, 0], sizes = [1, 256], strides = [1, 1]} : vector<11x256xf32> to vector<1x256xf32>
    %46 = vector.shape_cast %45 : vector<1x256xf32> to vector<256xf32>
    %47 = vector.shape_cast %46 : vector<256xf32> to vector<1x256xf32>
    %48 = vector.broadcast %47 : vector<1x256xf32> to vector<16x256xf32>
    %49 = arith.mulf %44, %48 : vector<16x256xf32>
    %50 = arith.addf %41, %49 : vector<16x256xf32>
    %c0_22 = arith.constant 0 : index
    %c0_23 = arith.constant 0 : index
    %51 = vector.load %arg4[%c0_22, %c0_23] : memref<256x256xbf16, #tpu.memory_space<vmem>>, vector<256x256xbf16>
    %cst_24 = arith.constant dense<0.000000e+00> : vector<16x256xf32>
    %52 = tpu.matmul %6, %51, %cst_24 {dimension_numbers = #tpu.dot_dimension_numbers<[1], [0], [0], [1], [0, 0, 1, 1], [], []>} : vector<16x256xbf16>, vector<256x256xbf16>, vector<16x256xf32> -> vector<16x256xf32>
    %53 = arith.addf %50, %52 : vector<16x256xf32>
    %54 = vector.extract_strided_slice %2 {offsets = [5, 0], sizes = [1, 256], strides = [1, 1]} : vector<11x256xf32> to vector<1x256xf32>
    %55 = vector.shape_cast %54 : vector<1x256xf32> to vector<256xf32>
    %56 = vector.shape_cast %55 : vector<256xf32> to vector<1x256xf32>
    %57 = vector.broadcast %56 : vector<1x256xf32> to vector<16x256xf32>
    %58 = arith.addf %53, %57 : vector<16x256xf32>
    %cst_25 = arith.constant 0.000000e+00 : f32
    %59 = vector.broadcast %cst_25 : f32 to vector<16x256xf32>
    %60 = arith.cmpf oge, %58, %59 : vector<16x256xf32>
    %61 = vector.extract_strided_slice %2 {offsets = [6, 0], sizes = [1, 256], strides = [1, 1]} : vector<11x256xf32> to vector<1x256xf32>
    %62 = vector.shape_cast %61 : vector<1x256xf32> to vector<256xf32>
    %63 = vector.shape_cast %62 : vector<256xf32> to vector<1x256xf32>
    %64 = vector.broadcast %63 : vector<1x256xf32> to vector<16x256xf32>
    %65 = arith.mulf %58, %64 : vector<16x256xf32>
    %66 = arith.select %60, %58, %65 : vector<16x256xi1>, vector<16x256xf32>
    %67 = arith.truncf %66 : vector<16x256xf32> to vector<16x256xbf16>
    %c0_26 = arith.constant 0 : index
    %c0_27 = arith.constant 0 : index
    %68 = vector.load %arg5[%c0_26, %c0_27] : memref<256x256xbf16, #tpu.memory_space<vmem>>, vector<256x256xbf16>
    %cst_28 = arith.constant dense<0.000000e+00> : vector<16x256xf32>
    %69 = tpu.matmul %67, %68, %cst_28 {dimension_numbers = #tpu.dot_dimension_numbers<[1], [0], [0], [1], [0, 0, 1, 1], [], []>} : vector<16x256xbf16>, vector<256x256xbf16>, vector<16x256xf32> -> vector<16x256xf32>
    %70 = vector.extract_strided_slice %2 {offsets = [7, 0], sizes = [1, 256], strides = [1, 1]} : vector<11x256xf32> to vector<1x256xf32>
    %71 = vector.shape_cast %70 : vector<1x256xf32> to vector<256xf32>
    %72 = vector.shape_cast %71 : vector<256xf32> to vector<1x256xf32>
    %73 = vector.broadcast %72 : vector<1x256xf32> to vector<16x256xf32>
    %74 = arith.addf %69, %73 : vector<16x256xf32>
    %75 = arith.addf %74, %1 : vector<16x256xf32>
    %76 = vector.extract_strided_slice %2 {offsets = [8, 0], sizes = [1, 256], strides = [1, 1]} : vector<11x256xf32> to vector<1x256xf32>
    %77 = vector.shape_cast %76 : vector<1x256xf32> to vector<256xf32>
    %78 = vector.shape_cast %77 : vector<256xf32> to vector<1x256xf32>
    %79 = vector.broadcast %78 : vector<1x256xf32> to vector<16x256xf32>
    %80 = arith.mulf %75, %79 : vector<16x256xf32>
    %81 = vector.extract_strided_slice %2 {offsets = [9, 0], sizes = [1, 256], strides = [1, 1]} : vector<11x256xf32> to vector<1x256xf32>
    %82 = vector.shape_cast %81 : vector<1x256xf32> to vector<256xf32>
    %83 = vector.shape_cast %82 : vector<256xf32> to vector<1x256xf32>
    %84 = vector.broadcast %83 : vector<1x256xf32> to vector<16x256xf32>
    %85 = arith.addf %80, %84 : vector<16x256xf32>
    %cst_29 = arith.constant 0.000000e+00 : f32
    %86 = vector.broadcast %cst_29 : f32 to vector<16x256xf32>
    %87 = arith.cmpf oge, %85, %86 : vector<16x256xf32>
    %88 = vector.extract_strided_slice %2 {offsets = [10, 0], sizes = [1, 256], strides = [1, 1]} : vector<11x256xf32> to vector<1x256xf32>
    %89 = vector.shape_cast %88 : vector<1x256xf32> to vector<256xf32>
    %90 = vector.shape_cast %89 : vector<256xf32> to vector<1x256xf32>
    %91 = vector.broadcast %90 : vector<1x256xf32> to vector<16x256xf32>
    %92 = arith.mulf %85, %91 : vector<16x256xf32>
    %93 = arith.select %87, %85, %92 : vector<16x256xi1>, vector<16x256xf32>
    %c0_30 = arith.constant 0 : index
    %c0_31 = arith.constant 0 : index
    %c0_32 = arith.constant 0 : index
    %94 = vector.load %arg7[%c0_30, %c0_31, %c0_32] : memref<1x16x256xf32, #tpu.memory_space<vmem>>, vector<1x16x256xf32>
    %95 = vector.shape_cast %94 : vector<1x16x256xf32> to vector<16x256xf32>
    %96 = vector.shape_cast %93 : vector<16x256xf32> to vector<1x16x256xf32>
    tpu.vector_store %arg7[%c0_30, %c0_31, %c0_32], %96 {strides = array<i32>} : memref<1x16x256xf32, #tpu.memory_space<vmem>>, vector<1x16x256xf32>,
    return
  }
  func.func @transform_0(%arg0: i32) -> (i32, i32, i32) {
    %c0_i32 = arith.constant 0 : i32
    %c0_i32_0 = arith.constant 0 : i32
    %c0_i32_1 = arith.constant 0 : i32
    return %arg0, %c0_i32, %c0_i32_0 : i32, i32, i32
  }
  func.func @transform_1(%arg0: i32) -> (i32, i32) {
    %c0_i32 = arith.constant 0 : i32
    %c0_i32_0 = arith.constant 0 : i32
    %c0_i32_1 = arith.constant 0 : i32
    return %c0_i32, %c0_i32_0 : i32, i32
  }
  func.func @transform_2(%arg0: i32) -> (i32, i32, i32) {
    %c0_i32 = arith.constant 0 : i32
    %c0_i32_0 = arith.constant 0 : i32
    %c0_i32_1 = arith.constant 0 : i32
    %c0_i32_2 = arith.constant 0 : i32
    return %c0_i32, %c0_i32_0, %c0_i32_1 : i32, i32, i32
  }
  func.func @transform_3(%arg0: i32) -> (i32, i32) {
    %c0_i32 = arith.constant 0 : i32
    %c0_i32_0 = arith.constant 0 : i32
    %c0_i32_1 = arith.constant 0 : i32
    return %c0_i32, %c0_i32_0 : i32, i32
  }
  func.func @transform_4(%arg0: i32) -> (i32, i32) {
    %c0_i32 = arith.constant 0 : i32
    %c0_i32_0 = arith.constant 0 : i32
    %c0_i32_1 = arith.constant 0 : i32
    return %c0_i32, %c0_i32_0 : i32, i32
  }
  func.func @transform_5(%arg0: i32) -> (i32, i32) {
    %c0_i32 = arith.constant 0 : i32
    %c0_i32_0 = arith.constant 0 : i32
    %c0_i32_1 = arith.constant 0 : i32
    return %c0_i32, %c0_i32_0 : i32, i32
  }
  func.func @transform_6(%arg0: i32) -> (i32, i32, i32) {
    %c0_i32 = arith.constant 0 : i32
    %c0_i32_0 = arith.constant 0 : i32
    %c0_i32_1 = arith.constant 0 : i32
    return %arg0, %c0_i32, %c0_i32_0 : i32, i32, i32
  }
}

</mosaic_0001>

<llo_original>
// kernel: tpu_custom_call.1
$region0: #{tpu_custom_call.1}
  #allocation0 [shape = 'u32[]', space=smem, size = 0x4, offset = 0x4, fixed_abs, tag = 'smem constant byte address 0x4 - core index']
  #allocation1 [shape = 'u32[144,128]{1,0:T(1,128)}', space=vmem, size = 0x12000, scoped, tag = 'internal scratch']
  %s0 = inlined_call_operand.hbm [shape: f32[2,16,256], index: 0, kind: input, shape index: {}]
  %s1 = inlined_call_operand.hbm [shape: bf16[256,256], index: 1, kind: input, shape index: {}]
  %s2 = inlined_call_operand.hbm [shape: bf16[5,16,16], index: 2, kind: input, shape index: {}]
  %s3 = inlined_call_operand.hbm [shape: bf16[256,256], index: 3, kind: input, shape index: {}]
  %s4 = inlined_call_operand.hbm [shape: bf16[256,256], index: 4, kind: input, shape index: {}]
  %s5 = inlined_call_operand.hbm [shape: f32[11,256], index: 5, kind: input, shape index: {}]
  %s6 = inlined_call_operand.hbm [shape: f32[2,16,256], index: 6, kind: output, shape index: {}]
  %s7 = sld [smem:[#allocation0]]
  $region81: #{tpu_custom_call.1} parent=0
    _
  %s9 = ssub.s32 1, %s7
  %s10 = scalar_select 0, %s9, %s7
  $region1: #{tpu_custom_call.1} parent=0
    #allocation2 [shape = 'u8[32768]{0}', space=vmem, size = 0x8000, scoped, tag = 'input window, operand 0']
    #allocation3 [shape = 's32[2]{0}', space=sflag, size = 0x8, scoped, tag = 'scoped memory for tpu_custom_call.1']
    #allocation4 [shape = 's32[2]{0}', space=sflag, size = 0x8, scoped, tag = 'scoped memory for tpu_custom_call.1']
    #allocation5 [shape = 'u8[131072]{0}', space=vmem, size = 0x20000, scoped, tag = 'input window, operand 1, single buffered']
    #allocation6 [shape = 's32[1]{0}', space=sflag, size = 0x4, scoped, tag = 'scoped memory for tpu_custom_call.1']
    #allocation7 [shape = 'u8[20480]{0}', space=vmem, size = 0x5000, scoped, tag = 'input window, operand 2, single buffered']
    #allocation8 [shape = 'u8[131072]{0}', space=vmem, size = 0x20000, scoped, tag = 'input window, operand 3, single buffered']
    #allocation9 [shape = 's32[1]{0}', space=sflag, size = 0x4, scoped, tag = 'scoped memory for tpu_custom_call.1']
    #allocation10 [shape = 'u8[131072]{0}', space=vmem, size = 0x20000, scoped, tag = 'input window, operand 4, single buffered']
    #allocation11 [shape = 'u8[16384]{0}', space=vmem, size = 0x4000, scoped, tag = 'input window, operand 5, single buffered']
    #allocation12 [shape = 's32[1]{0}', space=sflag, size = 0x4, scoped, tag = 'scoped memory for tpu_custom_call.1']
    #allocation13 [shape = 'u8[32768]{0}', space=vmem, size = 0x8000, scoped, tag = 'output window, operand 0']
    %11 = vsyncpa [#allocation3], 0
    %s12 = scalar_lea.sflag [#allocation3], 1
    %13 = vsyncpa %s12, 0
    %14 = vsyncpa [#allocation6], 0
    %15 = vsyncpa [#allocation9], 0
    %16 = vsyncpa [#allocation12], 0
    %17 = vsyncpa [#allocation4], 0
    %s18 = scalar_lea.sflag [#allocation4], 1
    %19 = vsyncpa %s18, 0
    loop: start=0, step=1, limit=4
    $region2: #{tpu_custom_call.1} parent=1 // loop_pre_header
      _
    $region3: #{tpu_custom_call.1} parent=1 // loop_header
      %s21 = sphi 0, %s25
      %p22 = scmp.ge.s32.totalorder %s21, 4
      %s31 = sphi 0, %s33
      %s34 = sphi 0, %s31
      %s35 = sphi 0, %s34
      %s51 = sphi 0, %s35
      %s55 = sphi 0, %s55
      %s57 = sphi 0, %s55
      %s58 = sphi 0, %s57
      %s72 = sphi 0, %s58
      %s76 = sphi 0, %s76
      %s78 = sphi 0, %s76
      %s79 = sphi 0, %s78
      %s93 = sphi 0, %s79
      %s97 = sphi 0, %s97
      %s99 = sphi 0, %s97
      %s100 = sphi 0, %s99
      %s114 = sphi 0, %s100
      %s118 = sphi 0, %s118
      %s120 = sphi 0, %s118
      %s121 = sphi 0, %s120
      %s135 = sphi 0, %s121
      %s139 = sphi 0, %s139
      %s141 = sphi 0, %s139
      %s142 = sphi 0, %s141
      %s156 = sphi 0, %s142
      %s162 = sphi 0, %s164
      %s165 = sphi 0, %s162
      %s166 = sphi 0, %s165
      %s182 = sphi 0, %s166
    $region4: #{tpu_custom_call.1} parent=1 // loop_header_branch
      %24 = sbr.rel (%p22) target = $region8
    $region5: #{tpu_custom_call.1} parent=1 // loop_body
      %s26 = ssub.s32 %s21, 1
      %s27 = ssub.s32 %s21, 2
      %s28 = sadd.s32 %s21, 1
      %s29 = ssub.s32 %s21, %s28
      %p30 = scmp.eq.s32.totalorder %s29, 0
      %s32 = sadd.s32 %s31, 1
      %s33 = scalar_select %p30, %s31, %s32
      %p36 = pneg %p30
      %p37 = scmp.eq.s32.totalorder %s21, 1
      %p38 = por %p36, %p37
      %p39 = scmp.ne.s32.totalorder %s31, %s34
      %p40 = scmp.eq.s32.totalorder %s21, 0
      %p41 = por %p39, %p40
      %p42 = scmp.ne.s32.totalorder %s31, %s34
      %p43 = scmp.eq.s32.totalorder %s26, 1
      %p44 = por %p42, %p43
      %p45 = scmp.ne.s32.totalorder %s34, %s35
      %p46 = scmp.eq.s32.totalorder %s26, 0
      %p47 = por %p45, %p46
      %p48 = scmp.ne.s32.totalorder %s34, %s35
      %p49 = scmp.eq.s32.totalorder %s27, 1
      %p50 = por %p48, %p49
      %p52 = scmp.ne.s32.totalorder %s35, %s51
      %p53 = scmp.eq.s32.totalorder %s27, 0
      %p54 = por %p52, %p53
      %s56 = sadd.s32 %s55, 1
      %p59 = scmp.eq.s32.totalorder %s21, 1
      %p60 = scmp.ne.s32.totalorder %s55, %s57
      %p61 = scmp.eq.s32.totalorder %s21, 0
      %p62 = por %p60, %p61
      %p63 = scmp.ne.s32.totalorder %s55, %s57
      %p64 = scmp.eq.s32.totalorder %s26, 1
      %p65 = por %p63, %p64
      %p66 = scmp.ne.s32.totalorder %s57, %s58
      %p67 = scmp.eq.s32.totalorder %s26, 0
      %p68 = por %p66, %p67
      %p69 = scmp.ne.s32.totalorder %s57, %s58
      %p70 = scmp.eq.s32.totalorder %s27, 1
      %p71 = por %p69, %p70
      %p73 = scmp.ne.s32.totalorder %s58, %s72
      %p74 = scmp.eq.s32.totalorder %s27, 0
      %p75 = por %p73, %p74
      %s77 = sadd.s32 %s76, 1
      %p80 = scmp.eq.s32.totalorder %s21, 1
      %p81 = scmp.ne.s32.totalorder %s76, %s78
      %p82 = scmp.eq.s32.totalorder %s21, 0
      %p83 = por %p81, %p82
      %p84 = scmp.ne.s32.totalorder %s76, %s78
      %p85 = scmp.eq.s32.totalorder %s26, 1
      %p86 = por %p84, %p85
      %p87 = scmp.ne.s32.totalorder %s78, %s79
      %p88 = scmp.eq.s32.totalorder %s26, 0
      %p89 = por %p87, %p88
      %p90 = scmp.ne.s32.totalorder %s78, %s79
      %p91 = scmp.eq.s32.totalorder %s27, 1
      %p92 = por %p90, %p91
      %p94 = scmp.ne.s32.totalorder %s79, %s93
      %p95 = scmp.eq.s32.totalorder %s27, 0
      %p96 = por %p94, %p95
      %s98 = sadd.s32 %s97, 1
      %p101 = scmp.eq.s32.totalorder %s21, 1
      %p102 = scmp.ne.s32.totalorder %s97, %s99
      %p103 = scmp.eq.s32.totalorder %s21, 0
      %p104 = por %p102, %p103
      %p105 = scmp.ne.s32.totalorder %s97, %s99
      %p106 = scmp.eq.s32.totalorder %s26, 1
      %p107 = por %p105, %p106
      %p108 = scmp.ne.s32.totalorder %s99, %s100
      %p109 = scmp.eq.s32.totalorder %s26, 0
      %p110 = por %p108, %p109
      %p111 = scmp.ne.s32.totalorder %s99, %s100
      %p112 = scmp.eq.s32.totalorder %s27, 1
      %p113 = por %p111, %p112
      %p115 = scmp.ne.s32.totalorder %s100, %s114
      %p116 = scmp.eq.s32.totalorder %s27, 0
      %p117 = por %p115, %p116
      %s119 = sadd.s32 %s118, 1
      %p122 = scmp.eq.s32.totalorder %s21, 1
      %p123 = scmp.ne.s32.totalorder %s118, %s120
      %p124 = scmp.eq.s32.totalorder %s21, 0
      %p125 = por %p123, %p124
      %p126 = scmp.ne.s32.totalorder %s118, %s120
      %p127 = scmp.eq.s32.totalorder %s26, 1
      %p128 = por %p126, %p127
      %p129 = scmp.ne.s32.totalorder %s120, %s121
      %p130 = scmp.eq.s32.totalorder %s26, 0
      %p131 = por %p129, %p130
      %p132 = scmp.ne.s32.totalorder %s120, %s121
      %p133 = scmp.eq.s32.totalorder %s27, 1
      %p134 = por %p132, %p133
      %p136 = scmp.ne.s32.totalorder %s121, %s135
      %p137 = scmp.eq.s32.totalorder %s27, 0
      %p138 = por %p136, %p137
      %s140 = sadd.s32 %s139, 1
      %p143 = scmp.eq.s32.totalorder %s21, 1
      %p144 = scmp.ne.s32.totalorder %s139, %s141
      %p145 = scmp.eq.s32.totalorder %s21, 0
      %p146 = por %p144, %p145
      %p147 = scmp.ne.s32.totalorder %s139, %s141
      %p148 = scmp.eq.s32.totalorder %s26, 1
      %p149 = por %p147, %p148
      %p150 = scmp.ne.s32.totalorder %s141, %s142
      %p151 = scmp.eq.s32.totalorder %s26, 0
      %p152 = por %p150, %p151
      %p153 = scmp.ne.s32.totalorder %s141, %s142
      %p154 = scmp.eq.s32.totalorder %s27, 1
      %p155 = por %p153, %p154
      %p157 = scmp.ne.s32.totalorder %s142, %s156
      %p158 = scmp.eq.s32.totalorder %s27, 0
      %p159 = por %p157, %p158
      %s160 = ssub.s32 %s21, %s28
      %p161 = scmp.eq.s32.totalorder %s160, 0
      %s163 = sadd.s32 %s162, 1
      %s164 = scalar_select %p161, %s162, %s163
      %p167 = pneg %p161
      %p168 = scmp.eq.s32.totalorder %s21, 1
      %p169 = por %p167, %p168
      %p170 = scmp.ne.s32.totalorder %s162, %s165
      %p171 = scmp.eq.s32.totalorder %s21, 0
      %p172 = por %p170, %p171
      %p173 = scmp.ne.s32.totalorder %s162, %s165
      %p174 = scmp.eq.s32.totalorder %s26, 1
      %p175 = por %p173, %p174
      %p176 = scmp.ne.s32.totalorder %s165, %s166
      %p177 = scmp.eq.s32.totalorder %s26, 0
      %p178 = por %p176, %p177
      %p179 = scmp.ne.s32.totalorder %s165, %s166
      %p180 = scmp.eq.s32.totalorder %s27, 1
      %p181 = por %p179, %p180
      %p183 = scmp.ne.s32.totalorder %s166, %s182
      %p184 = scmp.eq.s32.totalorder %s27, 0
      %p185 = por %p183, %p184
      %p186 = scmp.le.s32.totalorder 1, %s21
      %p187 = scmp.lt.s32.totalorder %s21, 3
      %p188 = pnand %p186, %p187
      %p189 = pneg %p188
      // Predicated region
      $region9: #{tpu_custom_call.1} parent=5 // pred_check
        _
      $region10: #{tpu_custom_call.1} parent=5 // pred_check_branch
        %191 = sbr.rel (%p188) target = $region12
      $region11: #{tpu_custom_call.1} parent=5 // pred_region
        %s192 = ssub.s32 %s21, 1
        // Predicated region
        $region13: #{tpu_custom_call.1} parent=11 // pred_check
          %p193 = pneg %p68
        $region14: #{tpu_custom_call.1} parent=11 // pred_check_branch
          %195 = sbr.rel (%p193) target = $region16
        $region15: #{tpu_custom_call.1} parent=11 // pred_region
          %s197 = ssub.s32 4096, 4096
          %198 = vsyncadd [#allocation6], %s197
          %s199 = sshll.u32 [#allocation5], 4
          %s200 = int_to_ptr.vmem [resolvable:$true] %s199
          %205 = dma.hbm_to_vmem [thread:$0]  %s1, 4096, %s200, [#allocation6], 128, 128, 8
        $region16: #{tpu_custom_call.1} parent=11 // pred_fallthru
          _
        // Predicated region
        $region17: #{tpu_custom_call.1} parent=11 // pred_check
          %p206 = pneg %p89
        $region18: #{tpu_custom_call.1} parent=11 // pred_check_branch
          %208 = sbr.rel (%p206) target = $region20
        $region19: #{tpu_custom_call.1} parent=11 // pred_region
          %s210 = ssub.s32 640, 640
          %211 = vsyncadd [#allocation6], %s210
          %s212 = sshll.u32 [#allocation7], 4
          %s213 = int_to_ptr.vmem [resolvable:$true] %s212
          %218 = dma.hbm_to_vmem [thread:$0]  %s2, 640, %s213, [#allocation6], 64, 64, 4
        $region20: #{tpu_custom_call.1} parent=11 // pred_fallthru
          _
        // Predicated region
        $region21: #{tpu_custom_call.1} parent=11 // pred_check
          %p219 = pneg %p110
        $region22: #{tpu_custom_call.1} parent=11 // pred_check_branch
          %221 = sbr.rel (%p219) target = $region24
        $region23: #{tpu_custom_call.1} parent=11 // pred_region
          %s223 = ssub.s32 4096, 4096
          %224 = vsyncadd [#allocation9], %s223
          %s225 = sshll.u32 [#allocation8], 4
          %s226 = int_to_ptr.vmem [resolvable:$true] %s225
          %231 = dma.hbm_to_vmem [thread:$0]  %s3, 4096, %s226, [#allocation9], 128, 128, 8
        $region24: #{tpu_custom_call.1} parent=11 // pred_fallthru
          _
        // Predicated region
        $region25: #{tpu_custom_call.1} parent=11 // pred_check
          %p232 = pneg %p131
        $region26: #{tpu_custom_call.1} parent=11 // pred_check_branch
          %234 = sbr.rel (%p232) target = $region28
        $region27: #{tpu_custom_call.1} parent=11 // pred_region
          %s236 = ssub.s32 4096, 4096
          %237 = vsyncadd [#allocation9], %s236
          %s238 = sshll.u32 [#allocation10], 4
          %s239 = int_to_ptr.vmem [resolvable:$true] %s238
          %244 = dma.hbm_to_vmem [thread:$0]  %s4, 4096, %s239, [#allocation9], 128, 128, 8
        $region28: #{tpu_custom_call.1} parent=11 // pred_fallthru
          _
        // Predicated region
        $region29: #{tpu_custom_call.1} parent=11 // pred_check
          %p245 = pneg %p152
        $region30: #{tpu_custom_call.1} parent=11 // pred_check_branch
          %247 = sbr.rel (%p245) target = $region32
        $region31: #{tpu_custom_call.1} parent=11 // pred_region
          %s249 = ssub.s32 512, 512
          %250 = vsyncadd [#allocation12], %s249
          %s251 = sshll.u32 [#allocation11], 4
          %s252 = int_to_ptr.vmem [resolvable:$true] %s251
          %257 = dma.hbm_to_vmem [thread:$0]  %s5, 512, %s252, [#allocation12], 256, 256, 16
        $region32: #{tpu_custom_call.1} parent=11 // pred_fallthru
          _
      $region12: #{tpu_custom_call.1} parent=5 // pred_fallthru
        _
      %p258 = scmp.lt.s32.totalorder %s21, 2
      // Predicated region
      $region33: #{tpu_custom_call.1} parent=5 // pred_check
        %p259 = pneg %p258
      $region34: #{tpu_custom_call.1} parent=5 // pred_check_branch
        %261 = sbr.rel (%p259) target = $region36
      $region35: #{tpu_custom_call.1} parent=5 // pred_region
        // Predicated region
        $region37: #{tpu_custom_call.1} parent=35 // pred_check
          %p262 = pneg %p41
        $region38: #{tpu_custom_call.1} parent=35 // pred_check_branch
          %264 = sbr.rel (%p262) target = $region40
        $region39: #{tpu_custom_call.1} parent=35 // pred_region
          %s265 = sand.u32 %s31, 1
          %s266 = scalar_lea.sflag [#allocation3], %s265
          %s267 = sand.u32 %s31, 1
          %s268 = smul.addr %s267, 32
          %s269 = scalar_lea.vmem [#allocation2], %s268
          %s271 = ssub.s32 512, 512
          %272 = vsyncadd %s266, %s271
          %s273 = smul.addr %s21, 4
          %s274 = smul.addr %s273, 128
          %s275 = scalar_lea.hbm %s0, %s274
          %s276 = sshll.u32 %s269, 4
          %s277 = int_to_ptr.vmem [resolvable:$true] %s276
          %282 = dma.hbm_to_vmem [thread:$0]  %s275, 512, %s277, %s266, 256, 256, 16
        $region40: #{tpu_custom_call.1} parent=35 // pred_fallthru
          _
      $region36: #{tpu_custom_call.1} parent=5 // pred_fallthru
        _
      %p283 = scmp.le.s32.totalorder 1, %s21
      %p284 = scmp.lt.s32.totalorder %s21, 3
      %p285 = pnand %p283, %p284
      %p286 = pneg %p285
      // Predicated region
      $region41: #{tpu_custom_call.1} parent=5 // pred_check
        _
      $region42: #{tpu_custom_call.1} parent=5 // pred_check_branch
        %288 = sbr.rel (%p285) target = $region44
      $region43: #{tpu_custom_call.1} parent=5 // pred_region
        %s289 = ssub.s32 %s21, 1
        %s290 = sand.u32 %s34, 1
        %s291 = scalar_lea.sflag [#allocation3], %s290
        %s292 = sand.u32 %s34, 1
        %s293 = smul.addr %s292, 32
        %s294 = scalar_lea.vmem [#allocation2], %s293
        // Predicated region
        $region45: #{tpu_custom_call.1} parent=43 // pred_check
          %p295 = pneg %p47
        $region46: #{tpu_custom_call.1} parent=43 // pred_check_branch
          %297 = sbr.rel (%p295) target = $region48
        $region47: #{tpu_custom_call.1} parent=43 // pred_region
          %298 = dma.done %s291, 512
        $region48: #{tpu_custom_call.1} parent=43 // pred_fallthru
          _
        // Predicated region
        $region49: #{tpu_custom_call.1} parent=43 // pred_check
          %p299 = pneg %p68
        $region50: #{tpu_custom_call.1} parent=43 // pred_check_branch
          %301 = sbr.rel (%p299) target = $region52
        $region51: #{tpu_custom_call.1} parent=43 // pred_region
          %302 = dma.done [#allocation6], 4096
        $region52: #{tpu_custom_call.1} parent=43 // pred_fallthru
          _
        // Predicated region
        $region53: #{tpu_custom_call.1} parent=43 // pred_check
          %p303 = pneg %p89
        $region54: #{tpu_custom_call.1} parent=43 // pred_check_branch
          %305 = sbr.rel (%p303) target = $region56
        $region55: #{tpu_custom_call.1} parent=43 // pred_region
          %306 = dma.done [#allocation6], 640
        $region56: #{tpu_custom_call.1} parent=43 // pred_fallthru
          _
        // Predicated region
        $region57: #{tpu_custom_call.1} parent=43 // pred_check
          %p307 = pneg %p110
        $region58: #{tpu_custom_call.1} parent=43 // pred_check_branch
          %309 = sbr.rel (%p307) target = $region60
        $region59: #{tpu_custom_call.1} parent=43 // pred_region
          %310 = dma.done [#allocation9], 4096
        $region60: #{tpu_custom_call.1} parent=43 // pred_fallthru
          _
        // Predicated region
        $region61: #{tpu_custom_call.1} parent=43 // pred_check
          %p311 = pneg %p131
        $region62: #{tpu_custom_call.1} parent=43 // pred_check_branch
          %313 = sbr.rel (%p311) target = $region64
        $region63: #{tpu_custom_call.1} parent=43 // pred_region
          %314 = dma.done [#allocation9], 4096
        $region64: #{tpu_custom_call.1} parent=43 // pred_fallthru
          _
        // Predicated region
        $region65: #{tpu_custom_call.1} parent=43 // pred_check
          %p315 = pneg %p152
        $region66: #{tpu_custom_call.1} parent=43 // pred_check_branch
          %317 = sbr.rel (%p315) target = $region68
        $region67: #{tpu_custom_call.1} parent=43 // pred_region
          %318 = dma.done [#allocation12], 512
        $region68: #{tpu_custom_call.1} parent=43 // pred_fallthru
          _
        %s319 = sand.u32 %s34, 1
        %s320 = scalar_lea.sflag [#allocation3], %s319
        %s321 = sand.u32 %s34, 1
        %s322 = smul.addr %s321, 32
        %s323 = scalar_lea.vmem [#allocation2], %s322
        %p324 = pneg %p47
        %p325 = pneg %p44
        %p326 = pneg %p68
        %p327 = pneg %p65
        %p328 = pneg %p89
        %p329 = pneg %p86
        %p330 = pneg %p110
        %p331 = pneg %p107
        %p332 = pneg %p131
        %p333 = pneg %p128
        %p334 = pneg %p152
        %p335 = pneg %p149
        %p336 = pneg %p178
        %p337 = pneg %p175
        %s338 = sand.u32 %s165, 1
        %s339 = scalar_lea.sflag [#allocation4], %s338
        %s340 = sand.u32 %s165, 1
        %s341 = smul.addr %s340, 32
        %s342 = scalar_lea.vmem [#allocation13], %s341
        %v344 = vld [vmem:[%s294] sm:$0xff]
        %v345 = vld [vmem:[%s294 + $0x8] sm:$0xff]
        %v346 = vld [vmem:[%s294 + $0x10] sm:$0xff]
        %v347 = vld [vmem:[%s294 + $0x18] sm:$0xff]
        %v348 = vld [vmem:[#allocation11] sm:$0xff]
        %v349 = vld [vmem:[#allocation11 + $0x8] sm:$0xff]
        %v350 = vld [vmem:[#allocation11 + $0x10] sm:$0x7]
        %v351 = vld [vmem:[#allocation11 + $0x18] sm:$0x7]
        %v352 = vpack.c.bf16 %v346, %v344
        %v353 = vpack.c.bf16 %v347, %v345
        %v354 = vld [vmem:[#allocation5] sm:$0xff]
        %v355 = vld [vmem:[#allocation5 + $0x8] sm:$0xff]
        %v356 = vld [vmem:[#allocation5 + $0x10] sm:$0xff]
        %v357 = vld [vmem:[#allocation5 + $0x18] sm:$0xff]
        %v358 = vld [vmem:[#allocation5 + $0x20] sm:$0xff]
        %v359 = vld [vmem:[#allocation5 + $0x28] sm:$0xff]
        %v360 = vld [vmem:[#allocation5 + $0x30] sm:$0xff]
        %v361 = vld [vmem:[#allocation5 + $0x38] sm:$0xff]
        %v362 = vld [vmem:[#allocation5 + $0x40] sm:$0xff]
        %v363 = vld [vmem:[#allocation5 + $0x48] sm:$0xff]
        %v364 = vld [vmem:[#allocation5 + $0x50] sm:$0xff]
        %v365 = vld [vmem:[#allocation5 + $0x58] sm:$0xff]
        %v366 = vld [vmem:[#allocation5 + $0x60] sm:$0xff]
        %v367 = vld [vmem:[#allocation5 + $0x68] sm:$0xff]
        %v368 = vld [vmem:[#allocation5 + $0x70] sm:$0xff]
        %v369 = vld [vmem:[#allocation5 + $0x78] sm:$0xff]
        %v370 = vld [vmem:[#allocation5 + $0x80] sm:$0xff]
        %v371 = vld [vmem:[#allocation5 + $0x88] sm:$0xff]
        %v372 = vld [vmem:[#allocation5 + $0x90] sm:$0xff]
        %v373 = vld [vmem:[#allocation5 + $0x98] sm:$0xff]
        %v374 = vld [vmem:[#allocation5 + $0xa0] sm:$0xff]
        %v375 = vld [vmem:[#allocation5 + $0xa8] sm:$0xff]
        %v376 = vld [vmem:[#allocation5 + $0xb0] sm:$0xff]
        %v377 = vld [vmem:[#allocation5 + $0xb8] sm:$0xff]
        %v378 = vld [vmem:[#allocation5 + $0xc0] sm:$0xff]
        %v379 = vld [vmem:[#allocation5 + $0xc8] sm:$0xff]
        %v380 = vld [vmem:[#allocation5 + $0xd0] sm:$0xff]
        %v381 = vld [vmem:[#allocation5 + $0xd8] sm:$0xff]
        %v382 = vld [vmem:[#allocation5 + $0xe0] sm:$0xff]
        %v383 = vld [vmem:[#allocation5 + $0xe8] sm:$0xff]
        %v384 = vld [vmem:[#allocation5 + $0xf0] sm:$0xff]
        %v385 = vld [vmem:[#allocation5 + $0xf8] sm:$0xff]
        %v418 = vunpack.c.l.b16 %v354
        %v419 = vunpack.c.h.b16 %v354
        %v420 = vunpack.c.l.b16 %v355
        %v421 = vunpack.c.h.b16 %v355
        %v422 = vunpack.c.l.b16 %v356
        %v423 = vunpack.c.h.b16 %v356
        %v424 = vunpack.c.l.b16 %v357
        %v425 = vunpack.c.h.b16 %v357
        %v426 = vunpack.c.l.b16 %v358
        %v427 = vunpack.c.h.b16 %v358
        %v428 = vunpack.c.l.b16 %v359
        %v429 = vunpack.c.h.b16 %v359
        %v430 = vunpack.c.l.b16 %v360
        %v431 = vunpack.c.h.b16 %v360
        %v432 = vunpack.c.l.b16 %v361
        %v433 = vunpack.c.h.b16 %v361
        %v434 = vunpack.c.l.b16 %v362
        %v435 = vunpack.c.h.b16 %v362
        %v436 = vunpack.c.l.b16 %v363
        %v437 = vunpack.c.h.b16 %v363
        %v438 = vunpack.c.l.b16 %v364
        %v439 = vunpack.c.h.b16 %v364
        %v440 = vunpack.c.l.b16 %v365
        %v441 = vunpack.c.h.b16 %v365
        %v442 = vunpack.c.l.b16 %v366
        %v443 = vunpack.c.h.b16 %v366
        %v444 = vunpack.c.l.b16 %v367
        %v445 = vunpack.c.h.b16 %v367
        %v446 = vunpack.c.l.b16 %v368
        %v447 = vunpack.c.h.b16 %v368
        %v448 = vunpack.c.l.b16 %v369
        %v449 = vunpack.c.h.b16 %v369
        %v450 = vunpack.c.l.b16 %v370
        %v451 = vunpack.c.h.b16 %v370
        %v452 = vunpack.c.l.b16 %v371
        %v453 = vunpack.c.h.b16 %v371
        %v454 = vunpack.c.l.b16 %v372
        %v455 = vunpack.c.h.b16 %v372
        %v456 = vunpack.c.l.b16 %v373
        %v457 = vunpack.c.h.b16 %v373
        %v458 = vunpack.c.l.b16 %v374
        %v459 = vunpack.c.h.b16 %v374
        %v460 = vunpack.c.l.b16 %v375
        %v461 = vunpack.c.h.b16 %v375
        %v462 = vunpack.c.l.b16 %v376
        %v463 = vunpack.c.h.b16 %v376
        %v464 = vunpack.c.l.b16 %v377
        %v465 = vunpack.c.h.b16 %v377
        %v466 = vunpack.c.l.b16 %v378
        %v467 = vunpack.c.h.b16 %v378
        %v468 = vunpack.c.l.b16 %v379
        %v469 = vunpack.c.h.b16 %v379
        %v470 = vunpack.c.l.b16 %v380
        %v471 = vunpack.c.h.b16 %v380
        %v472 = vunpack.c.l.b16 %v381
        %v473 = vunpack.c.h.b16 %v381
        %v474 = vunpack.c.l.b16 %v382
        %v475 = vunpack.c.h.b16 %v382
        %v476 = vunpack.c.l.b16 %v383
        %v477 = vunpack.c.h.b16 %v383
        %v478 = vunpack.c.l.b16 %v384
        %v479 = vunpack.c.h.b16 %v384
        %v480 = vunpack.c.l.b16 %v385
        %v481 = vunpack.c.h.b16 %v385
        %v482 = vpack.c.b16 %v420, %v418
        %v483 = vpack.c.b16 %v421, %v419
        %v484 = vpack.c.b16 %v424, %v422
        %v485 = vpack.c.b16 %v425, %v423
        %v486 = vpack.c.b16 %v428, %v426
        %v487 = vpack.c.b16 %v429, %v427
        %v488 = vpack.c.b16 %v432, %v430
        %v489 = vpack.c.b16 %v433, %v431
        %v490 = vpack.c.b16 %v436, %v434
        %v491 = vpack.c.b16 %v437, %v435
        %v492 = vpack.c.b16 %v440, %v438
        %v493 = vpack.c.b16 %v441, %v439
        %v494 = vpack.c.b16 %v444, %v442
        %v495 = vpack.c.b16 %v445, %v443
        %v496 = vpack.c.b16 %v448, %v446
        %v497 = vpack.c.b16 %v449, %v447
        %v498 = vpack.c.b16 %v452, %v450
        %v499 = vpack.c.b16 %v453, %v451
        %v500 = vpack.c.b16 %v456, %v454
        %v501 = vpack.c.b16 %v457, %v455
        %v502 = vpack.c.b16 %v460, %v458
        %v503 = vpack.c.b16 %v461, %v459
        %v504 = vpack.c.b16 %v464, %v462
        %v505 = vpack.c.b16 %v465, %v463
        %v506 = vpack.c.b16 %v468, %v466
        %v507 = vpack.c.b16 %v469, %v467
        %v508 = vpack.c.b16 %v472, %v470
        %v509 = vpack.c.b16 %v473, %v471
        %v510 = vpack.c.b16 %v476, %v474
        %v511 = vpack.c.b16 %v477, %v475
        %v512 = vpack.c.b16 %v480, %v478
        %v513 = vpack.c.b16 %v481, %v479
        %546 = vmatprep.subr.bf16.mxu0 %v483
        %547 = vmatpush1.bf16.msra.mxu0 %v482
        %548 = vmatprep.subr.bf16.mxu0 %v485
        %549 = vmatpush1.bf16.msra.mxu0 %v484
        %550 = vmatprep.subr.bf16.mxu0 %v487
        %551 = vmatpush1.bf16.msra.mxu0 %v486
        %552 = vmatprep.subr.bf16.mxu0 %v489
        %553 = vmatpush1.bf16.msra.mxu0 %v488
        %554 = vmatprep.subr.bf16.mxu0 %v491
        %555 = vmatpush1.bf16.msra.mxu0 %v490
        %556 = vmatprep.subr.bf16.mxu0 %v493
        %557 = vmatpush1.bf16.msra.mxu0 %v492
        %558 = vmatprep.subr.bf16.mxu0 %v495
        %559 = vmatpush1.bf16.msra.mxu0 %v494
        %560 = vmatprep.subr.bf16.mxu0 %v497
        %561 = vmatpush1.bf16.msra.mxu0 %v496
        %562 = vmatprep.subr.bf16.mxu0 %v499
        %563 = vmatpush1.bf16.msra.mxu0 %v498
        %564 = vmatprep.subr.bf16.mxu0 %v501
        %565 = vmatpush1.bf16.msra.mxu0 %v500
        %566 = vmatprep.subr.bf16.mxu0 %v503
        %567 = vmatpush1.bf16.msra.mxu0 %v502
        %568 = vmatprep.subr.bf16.mxu0 %v505
        %569 = vmatpush1.bf16.msra.mxu0 %v504
        %570 = vmatprep.subr.bf16.mxu0 %v507
        %571 = vmatpush1.bf16.msra.mxu0 %v506
        %572 = vmatprep.subr.bf16.mxu0 %v509
        %573 = vmatpush1.bf16.msra.mxu0 %v508
        %574 = vmatprep.subr.bf16.mxu0 %v511
        %575 = vmatpush1.bf16.msra.mxu0 %v510
        %576 = vmatprep.subr.bf16.mxu0 %v513
        %577 = vmatpush1.bf16.msra.mxu0 %v512
        %578 = vmatprep.mubr.bf16.mxu0 %v353
        %579 = vmatmul.mubr.bf16.gmra.mrb[0].mxu0 %v352
        %v580 = vpop.f32.mrb[0].mxu0
        %v581 = vadd.f32 0.0, %v580
        %v582 = vpop.f32.mrb[0].mxu0
        %v583 = vadd.f32 0.0, %v582
        %v584 = vpop.f32.mrb[0].mxu0
        %v585 = vadd.f32 0.0, %v584
        %v586 = vpop.f32.mrb[0].mxu0
        %v587 = vadd.f32 0.0, %v586
        %588 = vdwg.mxu0
        %v589 = vpack.c.bf16 %v585, %v581
        %v590 = vpack.c.bf16 %v587, %v583
        %v591 = vld [vmem:[#allocation7] sm:$0xf]
        %v592 = vld [vmem:[#allocation7 + $0x4] sm:$0xf]
        %v595 = vunpack.c.l.b16 %v591
        %v596 = vunpack.c.l.b16 %v592
        %v597 = vpack.c.b16 %v596, %v595
        %vm598 = vcmask 130048
        %v600 = vsel %vm598, %v597, 0
        %602 = vmatprep.subr.bf16.mxu0 %v590
        %603 = vmatpush1.bf16.msra.mxu0 %v589
        %604 = vmatprep.subr.bf16.mxu0 0
        %605 = vmatpush1.bf16.msra.mxu0 0
        %606 = vmatprep.subr.bf16.mxu0 0
        %607 = vmatpush1.bf16.msra.mxu0 0
        %608 = vmatprep.subr.bf16.mxu0 0
        %609 = vmatpush1.bf16.msra.mxu0 0
        %610 = vmatprep.subr.bf16.mxu0 0
        %611 = vmatpush1.bf16.msra.mxu0 0
        %612 = vmatprep.subr.bf16.mxu0 0
        %613 = vmatpush1.bf16.msra.mxu0 0
        %614 = vmatprep.subr.bf16.mxu0 0
        %615 = vmatpush1.bf16.msra.mxu0 0
        %616 = vmatprep.subr.bf16.mxu0 0
        %617 = vmatpush1.bf16.msra.mxu0 0
        %618 = vmatprep.subr.bf16.mxu0 0
        %619 = vmatpush1.bf16.msra.mxu0 0
        %620 = vmatprep.subr.bf16.mxu0 0
        %621 = vmatpush1.bf16.msra.mxu0 0
        %622 = vmatprep.subr.bf16.mxu0 0
        %623 = vmatpush1.bf16.msra.mxu0 0
        %624 = vmatprep.subr.bf16.mxu0 0
        %625 = vmatpush1.bf16.msra.mxu0 0
        %626 = vmatprep.subr.bf16.mxu0 0
        %627 = vmatpush1.bf16.msra.mxu0 0
        %628 = vmatprep.subr.bf16.mxu0 0
        %629 = vmatpush1.bf16.msra.mxu0 0
        %630 = vmatprep.subr.bf16.mxu0 0
        %631 = vmatpush1.bf16.msra.mxu0 0
        %632 = vmatprep.subr.bf16.mxu0 0
        %633 = vmatpush1.bf16.msra.mxu0 0
        %634 = vmatprep.mubr.bf16.mxu0 0
        %635 = vmatmul.mubr.bf16.gmra.mrb[0].mxu0 %v600
        %v636 = vpop.f32.mrb[0].mxu0
        %v637 = vadd.f32 0.0, %v636
        %v638 = vpop.f32.mrb[0].mxu0
        %v639 = vadd.f32 0.0, %v638
        %v640 = vpop.f32.mrb[0].mxu0
        %v641 = vadd.f32 0.0, %v640
        %v642 = vpop.f32.mrb[0].mxu0
        %v643 = vadd.f32 0.0, %v642
        %644 = vdwg.mxu0
        %v645 = vlaneseq
        %v646 = vshrl.u32 %v645, 7
        %v647 = vsub.s32 0, %v646
        %v648 = vrot.slane %v348, %v647
        %v649 = vlaneseq
        %v650 = vshrl.u32 %v649, 7
        %v651 = vsub.s32 0, %v650
        %v652 = vrot.slane %v349, %v651
        %v653 = vmul.f32 %v637, %v648
        %v654 = vmul.f32 %v639, %v652
        %v655 = vmul.f32 %v641, %v648
        %v656 = vmul.f32 %v643, %v652
        %s657 = scalar_lea.vmem [#allocation7], 8
        %v658 = vld [vmem:[%s657] sm:$0xf]
        %v659 = vld [vmem:[%s657 + $0x4] sm:$0xf]
        %v662 = vunpack.c.l.b16 %v658
        %v663 = vunpack.c.l.b16 %v659
        %v664 = vpack.c.b16 %v663, %v662
        %v666 = vsel %vm598, %v664, 0
        %668 = vmatprep.subr.bf16.mxu0 %v590
        %669 = vmatpush1.bf16.msra.mxu0 %v589
        %670 = vmatprep.subr.bf16.mxu0 0
        %671 = vmatpush1.bf16.msra.mxu0 0
        %672 = vmatprep.subr.bf16.mxu0 0
        %673 = vmatpush1.bf16.msra.mxu0 0
        %674 = vmatprep.subr.bf16.mxu0 0
        %675 = vmatpush1.bf16.msra.mxu0 0
        %676 = vmatprep.subr.bf16.mxu0 0
        %677 = vmatpush1.bf16.msra.mxu0 0
        %678 = vmatprep.subr.bf16.mxu0 0
        %679 = vmatpush1.bf16.msra.mxu0 0
        %680 = vmatprep.subr.bf16.mxu0 0
        %681 = vmatpush1.bf16.msra.mxu0 0
        %682 = vmatprep.subr.bf16.mxu0 0
        %683 = vmatpush1.bf16.msra.mxu0 0
        %684 = vmatprep.subr.bf16.mxu0 0
        %685 = vmatpush1.bf16.msra.mxu0 0
        %686 = vmatprep.subr.bf16.mxu0 0
        %687 = vmatpush1.bf16.msra.mxu0 0
        %688 = vmatprep.subr.bf16.mxu0 0
        %689 = vmatpush1.bf16.msra.mxu0 0
        %690 = vmatprep.subr.bf16.mxu0 0
        %691 = vmatpush1.bf16.msra.mxu0 0
        %692 = vmatprep.subr.bf16.mxu0 0
        %693 = vmatpush1.bf16.msra.mxu0 0
        %694 = vmatprep.subr.bf16.mxu0 0
        %695 = vmatpush1.bf16.msra.mxu0 0
        %696 = vmatprep.subr.bf16.mxu0 0
        %697 = vmatpush1.bf16.msra.mxu0 0
        %698 = vmatprep.subr.bf16.mxu0 0
        %699 = vmatpush1.bf16.msra.mxu0 0
        %700 = vmatprep.mubr.bf16.mxu0 0
        %701 = vmatmul.mubr.bf16.gmra.mrb[0].mxu0 %v666
        %v702 = vpop.f32.mrb[0].mxu0
        %v703 = vadd.f32 0.0, %v702
        %v704 = vpop.f32.mrb[0].mxu0
        %v705 = vadd.f32 0.0, %v704
        %v706 = vpop.f32.mrb[0].mxu0
        %v707 = vadd.f32 0.0, %v706
        %v708 = vpop.f32.mrb[0].mxu0
        %v709 = vadd.f32 0.0, %v708
        %710 = vdwg.mxu0
        %v711 = vlaneseq
        %v712 = vshrl.u32 %v711, 7
        %v713 = vsub.s32 1, %v712
        %v714 = vrot.slane %v348, %v713
        %v715 = vlaneseq
        %v716 = vshrl.u32 %v715, 7
        %v717 = vsub.s32 1, %v716
        %v718 = vrot.slane %v349, %v717
        %v719 = vmul.f32 %v703, %v714
        %v720 = vmul.f32 %v705, %v718
        %v721 = vmul.f32 %v707, %v714
        %v722 = vmul.f32 %v709, %v718
        %v723 = vadd.f32 %v653, %v719
        %v724 = vadd.f32 %v654, %v720
        %v725 = vadd.f32 %v655, %v721
        %v726 = vadd.f32 %v656, %v722
        %s727 = scalar_lea.vmem [#allocation7], 16
        %v728 = vld [vmem:[%s727] sm:$0xf]
        %v729 = vld [vmem:[%s727 + $0x4] sm:$0xf]
        %v732 = vunpack.c.l.b16 %v728
        %v733 = vunpack.c.l.b16 %v729
        %v734 = vpack.c.b16 %v733, %v732
        %v736 = vsel %vm598, %v734, 0
        %738 = vmatprep.subr.bf16.mxu0 %v590
        %739 = vmatpush1.bf16.msra.mxu0 %v589
        %740 = vmatprep.subr.bf16.mxu0 0
        %741 = vmatpush1.bf16.msra.mxu0 0
        %742 = vmatprep.subr.bf16.mxu0 0
        %743 = vmatpush1.bf16.msra.mxu0 0
        %744 = vmatprep.subr.bf16.mxu0 0
        %745 = vmatpush1.bf16.msra.mxu0 0
        %746 = vmatprep.subr.bf16.mxu0 0
        %747 = vmatpush1.bf16.msra.mxu0 0
        %748 = vmatprep.subr.bf16.mxu0 0
        %749 = vmatpush1.bf16.msra.mxu0 0
        %750 = vmatprep.subr.bf16.mxu0 0
        %751 = vmatpush1.bf16.msra.mxu0 0
        %752 = vmatprep.subr.bf16.mxu0 0
        %753 = vmatpush1.bf16.msra.mxu0 0
        %754 = vmatprep.subr.bf16.mxu0 0
        %755 = vmatpush1.bf16.msra.mxu0 0
        %756 = vmatprep.subr.bf16.mxu0 0
        %757 = vmatpush1.bf16.msra.mxu0 0
        %758 = vmatprep.subr.bf16.mxu0 0
        %759 = vmatpush1.bf16.msra.mxu0 0
        %760 = vmatprep.subr.bf16.mxu0 0
        %761 = vmatpush1.bf16.msra.mxu0 0
        %762 = vmatprep.subr.bf16.mxu0 0
        %763 = vmatpush1.bf16.msra.mxu0 0
        %764 = vmatprep.subr.bf16.mxu0 0
        %765 = vmatpush1.bf16.msra.mxu0 0
        %766 = vmatprep.subr.bf16.mxu0 0
        %767 = vmatpush1.bf16.msra.mxu0 0
        %768 = vmatprep.subr.bf16.mxu0 0
        %769 = vmatpush1.bf16.msra.mxu0 0
        %770 = vmatprep.mubr.bf16.mxu0 0
        %771 = vmatmul.mubr.bf16.gmra.mrb[0].mxu0 %v736
        %v772 = vpop.f32.mrb[0].mxu0
        %v773 = vadd.f32 0.0, %v772
        %v774 = vpop.f32.mrb[0].mxu0
        %v775 = vadd.f32 0.0, %v774
        %v776 = vpop.f32.mrb[0].mxu0
        %v777 = vadd.f32 0.0, %v776
        %v778 = vpop.f32.mrb[0].mxu0
        %v779 = vadd.f32 0.0, %v778
        %780 = vdwg.mxu0
        %v781 = vlaneseq
        %v782 = vshrl.u32 %v781, 7
        %v783 = vsub.s32 2, %v782
        %v784 = vrot.slane %v348, %v783
        %v785 = vlaneseq
        %v786 = vshrl.u32 %v785, 7
        %v787 = vsub.s32 2, %v786
        %v788 = vrot.slane %v349, %v787
        %v789 = vmul.f32 %v773, %v784
        %v790 = vmul.f32 %v775, %v788
        %v791 = vmul.f32 %v777, %v784
        %v792 = vmul.f32 %v779, %v788
        %v793 = vadd.f32 %v723, %v789
        %v794 = vadd.f32 %v724, %v790
        %v795 = vadd.f32 %v725, %v791
        %v796 = vadd.f32 %v726, %v792
        %s797 = scalar_lea.vmem [#allocation7], 24
        %v798 = vld [vmem:[%s797] sm:$0xf]
        %v799 = vld [vmem:[%s797 + $0x4] sm:$0xf]
        %v802 = vunpack.c.l.b16 %v798
        %v803 = vunpack.c.l.b16 %v799
        %v804 = vpack.c.b16 %v803, %v802
        %v806 = vsel %vm598, %v804, 0
        %808 = vmatprep.subr.bf16.mxu0 %v590
        %809 = vmatpush1.bf16.msra.mxu0 %v589
        %810 = vmatprep.subr.bf16.mxu0 0
        %811 = vmatpush1.bf16.msra.mxu0 0
        %812 = vmatprep.subr.bf16.mxu0 0
        %813 = vmatpush1.bf16.msra.mxu0 0
        %814 = vmatprep.subr.bf16.mxu0 0
        %815 = vmatpush1.bf16.msra.mxu0 0
        %816 = vmatprep.subr.bf16.mxu0 0
        %817 = vmatpush1.bf16.msra.mxu0 0
        %818 = vmatprep.subr.bf16.mxu0 0
        %819 = vmatpush1.bf16.msra.mxu0 0
        %820 = vmatprep.subr.bf16.mxu0 0
        %821 = vmatpush1.bf16.msra.mxu0 0
        %822 = vmatprep.subr.bf16.mxu0 0
        %823 = vmatpush1.bf16.msra.mxu0 0
        %824 = vmatprep.subr.bf16.mxu0 0
        %825 = vmatpush1.bf16.msra.mxu0 0
        %826 = vmatprep.subr.bf16.mxu0 0
        %827 = vmatpush1.bf16.msra.mxu0 0
        %828 = vmatprep.subr.bf16.mxu0 0
        %829 = vmatpush1.bf16.msra.mxu0 0
        %830 = vmatprep.subr.bf16.mxu0 0
        %831 = vmatpush1.bf16.msra.mxu0 0
        %832 = vmatprep.subr.bf16.mxu0 0
        %833 = vmatpush1.bf16.msra.mxu0 0
        %834 = vmatprep.subr.bf16.mxu0 0
        %835 = vmatpush1.bf16.msra.mxu0 0
        %836 = vmatprep.subr.bf16.mxu0 0
        %837 = vmatpush1.bf16.msra.mxu0 0
        %838 = vmatprep.subr.bf16.mxu0 0
        %839 = vmatpush1.bf16.msra.mxu0 0
        %840 = vmatprep.mubr.bf16.mxu0 0
        %841 = vmatmul.mubr.bf16.gmra.mrb[0].mxu0 %v806
        %v842 = vpop.f32.mrb[0].mxu0
        %v843 = vadd.f32 0.0, %v842
        %v844 = vpop.f32.mrb[0].mxu0
        %v845 = vadd.f32 0.0, %v844
        %v846 = vpop.f32.mrb[0].mxu0
        %v847 = vadd.f32 0.0, %v846
        %v848 = vpop.f32.mrb[0].mxu0
        %v849 = vadd.f32 0.0, %v848
        %850 = vdwg.mxu0
        %v851 = vlaneseq
        %v852 = vshrl.u32 %v851, 7
        %v853 = vsub.s32 3, %v852
        %v854 = vrot.slane %v348, %v853
        %v855 = vlaneseq
        %v856 = vshrl.u32 %v855, 7
        %v857 = vsub.s32 3, %v856
        %v858 = vrot.slane %v349, %v857
        %v859 = vmul.f32 %v843, %v854
        %v860 = vmul.f32 %v845, %v858
        %v861 = vmul.f32 %v847, %v854
        %v862 = vmul.f32 %v849, %v858
        %v863 = vadd.f32 %v793, %v859
        %v864 = vadd.f32 %v794, %v860
        %v865 = vadd.f32 %v795, %v861
        %v866 = vadd.f32 %v796, %v862
        %s867 = scalar_lea.vmem [#allocation7], 32
        %v868 = vld [vmem:[%s867] sm:$0xf]
        %v869 = vld [vmem:[%s867 + $0x4] sm:$0xf]
        %v872 = vunpack.c.l.b16 %v868
        %v873 = vunpack.c.l.b16 %v869
        %v874 = vpack.c.b16 %v873, %v872
        %v876 = vsel %vm598, %v874, 0
        %878 = vmatprep.subr.bf16.mxu0 %v590
        %879 = vmatpush1.bf16.msra.mxu0 %v589
        %880 = vmatprep.subr.bf16.mxu0 0
        %881 = vmatpush1.bf16.msra.mxu0 0
        %882 = vmatprep.subr.bf16.mxu0 0
        %883 = vmatpush1.bf16.msra.mxu0 0
        %884 = vmatprep.subr.bf16.mxu0 0
        %885 = vmatpush1.bf16.msra.mxu0 0
        %886 = vmatprep.subr.bf16.mxu0 0
        %887 = vmatpush1.bf16.msra.mxu0 0
        %888 = vmatprep.subr.bf16.mxu0 0
        %889 = vmatpush1.bf16.msra.mxu0 0
        %890 = vmatprep.subr.bf16.mxu0 0
        %891 = vmatpush1.bf16.msra.mxu0 0
        %892 = vmatprep.subr.bf16.mxu0 0
        %893 = vmatpush1.bf16.msra.mxu0 0
        %894 = vmatprep.subr.bf16.mxu0 0
        %895 = vmatpush1.bf16.msra.mxu0 0
        %896 = vmatprep.subr.bf16.mxu0 0
        %897 = vmatpush1.bf16.msra.mxu0 0
        %898 = vmatprep.subr.bf16.mxu0 0
        %899 = vmatpush1.bf16.msra.mxu0 0
        %900 = vmatprep.subr.bf16.mxu0 0
        %901 = vmatpush1.bf16.msra.mxu0 0
        %902 = vmatprep.subr.bf16.mxu0 0
        %903 = vmatpush1.bf16.msra.mxu0 0
        %904 = vmatprep.subr.bf16.mxu0 0
        %905 = vmatpush1.bf16.msra.mxu0 0
        %906 = vmatprep.subr.bf16.mxu0 0
        %907 = vmatpush1.bf16.msra.mxu0 0
        %908 = vmatprep.subr.bf16.mxu0 0
        %909 = vmatpush1.bf16.msra.mxu0 0
        %910 = vmatprep.mubr.bf16.mxu0 0
        %911 = vmatmul.mubr.bf16.gmra.mrb[0].mxu0 %v876
        %v912 = vpop.f32.mrb[0].mxu0
        %v913 = vadd.f32 0.0, %v912
        %v914 = vpop.f32.mrb[0].mxu0
        %v915 = vadd.f32 0.0, %v914
        %v916 = vpop.f32.mrb[0].mxu0
        %v917 = vadd.f32 0.0, %v916
        %v918 = vpop.f32.mrb[0].mxu0
        %v919 = vadd.f32 0.0, %v918
        %920 = vdwg.mxu0
        %v921 = vlaneseq
        %v922 = vshrl.u32 %v921, 7
        %v923 = vsub.s32 4, %v922
        %v924 = vrot.slane %v348, %v923
        %v925 = vlaneseq
        %v926 = vshrl.u32 %v925, 7
        %v927 = vsub.s32 4, %v926
        %v928 = vrot.slane %v349, %v927
        %v929 = vmul.f32 %v913, %v924
        %v930 = vmul.f32 %v915, %v928
        %v931 = vmul.f32 %v917, %v924
        %v932 = vmul.f32 %v919, %v928
        %v933 = vadd.f32 %v863, %v929
        %v934 = vadd.f32 %v864, %v930
        %v935 = vadd.f32 %v865, %v931
        %v936 = vadd.f32 %v866, %v932
        %v937 = vld [vmem:[#allocation8] sm:$0xff]
        %v938 = vld [vmem:[#allocation8 + $0x8] sm:$0xff]
        %v939 = vld [vmem:[#allocation8 + $0x10] sm:$0xff]
        %v940 = vld [vmem:[#allocation8 + $0x18] sm:$0xff]
        %v941 = vld [vmem:[#allocation8 + $0x20] sm:$0xff]
        %v942 = vld [vmem:[#allocation8 + $0x28] sm:$0xff]
        %v943 = vld [vmem:[#allocation8 + $0x30] sm:$0xff]
        %v944 = vld [vmem:[#allocation8 + $0x38] sm:$0xff]
        %v945 = vld [vmem:[#allocation8 + $0x40] sm:$0xff]
        %v946 = vld [vmem:[#allocation8 + $0x48] sm:$0xff]
        %v947 = vld [vmem:[#allocation8 + $0x50] sm:$0xff]
        %v948 = vld [vmem:[#allocation8 + $0x58] sm:$0xff]
        %v949 = vld [vmem:[#allocation8 + $0x60] sm:$0xff]
        %v950 = vld [vmem:[#allocation8 + $0x68] sm:$0xff]
        %v951 = vld [vmem:[#allocation8 + $0x70] sm:$0xff]
        %v952 = vld [vmem:[#allocation8 + $0x78] sm:$0xff]
        %v953 = vld [vmem:[#allocation8 + $0x80] sm:$0xff]
        %v954 = vld [vmem:[#allocation8 + $0x88] sm:$0xff]
        %v955 = vld [vmem:[#allocation8 + $0x90] sm:$0xff]
        %v956 = vld [vmem:[#allocation8 + $0x98] sm:$0xff]
        %v957 = vld [vmem:[#allocation8 + $0xa0] sm:$0xff]
        %v958 = vld [vmem:[#allocation8 + $0xa8] sm:$0xff]
        %v959 = vld [vmem:[#allocation8 + $0xb0] sm:$0xff]
        %v960 = vld [vmem:[#allocation8 + $0xb8] sm:$0xff]
        %v961 = vld [vmem:[#allocation8 + $0xc0] sm:$0xff]
        %v962 = vld [vmem:[#allocation8 + $0xc8] sm:$0xff]
        %v963 = vld [vmem:[#allocation8 + $0xd0] sm:$0xff]
        %v964 = vld [vmem:[#allocation8 + $0xd8] sm:$0xff]
        %v965 = vld [vmem:[#allocation8 + $0xe0] sm:$0xff]
        %v966 = vld [vmem:[#allocation8 + $0xe8] sm:$0xff]
        %v967 = vld [vmem:[#allocation8 + $0xf0] sm:$0xff]
        %v968 = vld [vmem:[#allocation8 + $0xf8] sm:$0xff]
        %v1001 = vunpack.c.l.b16 %v937
        %v1002 = vunpack.c.h.b16 %v937
        %v1003 = vunpack.c.l.b16 %v938
        %v1004 = vunpack.c.h.b16 %v938
        %v1005 = vunpack.c.l.b16 %v939
        %v1006 = vunpack.c.h.b16 %v939
        %v1007 = vunpack.c.l.b16 %v940
        %v1008 = vunpack.c.h.b16 %v940
        %v1009 = vunpack.c.l.b16 %v941
        %v1010 = vunpack.c.h.b16 %v941
        %v1011 = vunpack.c.l.b16 %v942
        %v1012 = vunpack.c.h.b16 %v942
        %v1013 = vunpack.c.l.b16 %v943
        %v1014 = vunpack.c.h.b16 %v943
        %v1015 = vunpack.c.l.b16 %v944
        %v1016 = vunpack.c.h.b16 %v944
        %v1017 = vunpack.c.l.b16 %v945
        %v1018 = vunpack.c.h.b16 %v945
        %v1019 = vunpack.c.l.b16 %v946
        %v1020 = vunpack.c.h.b16 %v946
        %v1021 = vunpack.c.l.b16 %v947
        %v1022 = vunpack.c.h.b16 %v947
        %v1023 = vunpack.c.l.b16 %v948
        %v1024 = vunpack.c.h.b16 %v948
        %v1025 = vunpack.c.l.b16 %v949
        %v1026 = vunpack.c.h.b16 %v949
        %v1027 = vunpack.c.l.b16 %v950
        %v1028 = vunpack.c.h.b16 %v950
        %v1029 = vunpack.c.l.b16 %v951
        %v1030 = vunpack.c.h.b16 %v951
        %v1031 = vunpack.c.l.b16 %v952
        %v1032 = vunpack.c.h.b16 %v952
        %v1033 = vunpack.c.l.b16 %v953
        %v1034 = vunpack.c.h.b16 %v953
        %v1035 = vunpack.c.l.b16 %v954
        %v1036 = vunpack.c.h.b16 %v954
        %v1037 = vunpack.c.l.b16 %v955
        %v1038 = vunpack.c.h.b16 %v955
        %v1039 = vunpack.c.l.b16 %v956
        %v1040 = vunpack.c.h.b16 %v956
        %v1041 = vunpack.c.l.b16 %v957
        %v1042 = vunpack.c.h.b16 %v957
        %v1043 = vunpack.c.l.b16 %v958
        %v1044 = vunpack.c.h.b16 %v958
        %v1045 = vunpack.c.l.b16 %v959
        %v1046 = vunpack.c.h.b16 %v959
        %v1047 = vunpack.c.l.b16 %v960
        %v1048 = vunpack.c.h.b16 %v960
        %v1049 = vunpack.c.l.b16 %v961
        %v1050 = vunpack.c.h.b16 %v961
        %v1051 = vunpack.c.l.b16 %v962
        %v1052 = vunpack.c.h.b16 %v962
        %v1053 = vunpack.c.l.b16 %v963
        %v1054 = vunpack.c.h.b16 %v963
        %v1055 = vunpack.c.l.b16 %v964
        %v1056 = vunpack.c.h.b16 %v964
        %v1057 = vunpack.c.l.b16 %v965
        %v1058 = vunpack.c.h.b16 %v965
        %v1059 = vunpack.c.l.b16 %v966
        %v1060 = vunpack.c.h.b16 %v966
        %v1061 = vunpack.c.l.b16 %v967
        %v1062 = vunpack.c.h.b16 %v967
        %v1063 = vunpack.c.l.b16 %v968
        %v1064 = vunpack.c.h.b16 %v968
        %v1065 = vpack.c.b16 %v1003, %v1001
        %v1066 = vpack.c.b16 %v1004, %v1002
        %v1067 = vpack.c.b16 %v1007, %v1005
        %v1068 = vpack.c.b16 %v1008, %v1006
        %v1069 = vpack.c.b16 %v1011, %v1009
        %v1070 = vpack.c.b16 %v1012, %v1010
        %v1071 = vpack.c.b16 %v1015, %v1013
        %v1072 = vpack.c.b16 %v1016, %v1014
        %v1073 = vpack.c.b16 %v1019, %v1017
        %v1074 = vpack.c.b16 %v1020, %v1018
        %v1075 = vpack.c.b16 %v1023, %v1021
        %v1076 = vpack.c.b16 %v1024, %v1022
        %v1077 = vpack.c.b16 %v1027, %v1025
        %v1078 = vpack.c.b16 %v1028, %v1026
        %v1079 = vpack.c.b16 %v1031, %v1029
        %v1080 = vpack.c.b16 %v1032, %v1030
        %v1081 = vpack.c.b16 %v1035, %v1033
        %v1082 = vpack.c.b16 %v1036, %v1034
        %v1083 = vpack.c.b16 %v1039, %v1037
        %v1084 = vpack.c.b16 %v1040, %v1038
        %v1085 = vpack.c.b16 %v1043, %v1041
        %v1086 = vpack.c.b16 %v1044, %v1042
        %v1087 = vpack.c.b16 %v1047, %v1045
        %v1088 = vpack.c.b16 %v1048, %v1046
        %v1089 = vpack.c.b16 %v1051, %v1049
        %v1090 = vpack.c.b16 %v1052, %v1050
        %v1091 = vpack.c.b16 %v1055, %v1053
        %v1092 = vpack.c.b16 %v1056, %v1054
        %v1093 = vpack.c.b16 %v1059, %v1057
        %v1094 = vpack.c.b16 %v1060, %v1058
        %v1095 = vpack.c.b16 %v1063, %v1061
        %v1096 = vpack.c.b16 %v1064, %v1062
        %1129 = vmatprep.subr.bf16.mxu0 %v1066
        %1130 = vmatpush1.bf16.msra.mxu0 %v1065
        %1131 = vmatprep.subr.bf16.mxu0 %v1068
        %1132 = vmatpush1.bf16.msra.mxu0 %v1067
        %1133 = vmatprep.subr.bf16.mxu0 %v1070
        %1134 = vmatpush1.bf16.msra.mxu0 %v1069
        %1135 = vmatprep.subr.bf16.mxu0 %v1072
        %1136 = vmatpush1.bf16.msra.mxu0 %v1071
        %1137 = vmatprep.subr.bf16.mxu0 %v1074
        %1138 = vmatpush1.bf16.msra.mxu0 %v1073
        %1139 = vmatprep.subr.bf16.mxu0 %v1076
        %1140 = vmatpush1.bf16.msra.mxu0 %v1075
        %1141 = vmatprep.subr.bf16.mxu0 %v1078
        %1142 = vmatpush1.bf16.msra.mxu0 %v1077
        %1143 = vmatprep.subr.bf16.mxu0 %v1080
        %1144 = vmatpush1.bf16.msra.mxu0 %v1079
        %1145 = vmatprep.subr.bf16.mxu0 %v1082
        %1146 = vmatpush1.bf16.msra.mxu0 %v1081
        %1147 = vmatprep.subr.bf16.mxu0 %v1084
        %1148 = vmatpush1.bf16.msra.mxu0 %v1083
        %1149 = vmatprep.subr.bf16.mxu0 %v1086
        %1150 = vmatpush1.bf16.msra.mxu0 %v1085
        %1151 = vmatprep.subr.bf16.mxu0 %v1088
        %1152 = vmatpush1.bf16.msra.mxu0 %v1087
        %1153 = vmatprep.subr.bf16.mxu0 %v1090
        %1154 = vmatpush1.bf16.msra.mxu0 %v1089
        %1155 = vmatprep.subr.bf16.mxu0 %v1092
        %1156 = vmatpush1.bf16.msra.mxu0 %v1091
        %1157 = vmatprep.subr.bf16.mxu0 %v1094
        %1158 = vmatpush1.bf16.msra.mxu0 %v1093
        %1159 = vmatprep.subr.bf16.mxu0 %v1096
        %1160 = vmatpush1.bf16.msra.mxu0 %v1095
        %1161 = vmatprep.mubr.bf16.mxu0 %v590
        %1162 = vmatmul.mubr.bf16.gmra.mrb[0].mxu0 %v589
        %v1163 = vpop.f32.mrb[0].mxu0
        %v1164 = vadd.f32 0.0, %v1163
        %v1165 = vpop.f32.mrb[0].mxu0
        %v1166 = vadd.f32 0.0, %v1165
        %v1167 = vpop.f32.mrb[0].mxu0
        %v1168 = vadd.f32 0.0, %v1167
        %v1169 = vpop.f32.mrb[0].mxu0
        %v1170 = vadd.f32 0.0, %v1169
        %1171 = vdwg.mxu0
        %v1172 = vadd.f32 %v933, %v1164
        %v1173 = vadd.f32 %v934, %v1166
        %v1174 = vadd.f32 %v935, %v1168
        %v1175 = vadd.f32 %v936, %v1170
        %v1176 = vlaneseq
        %v1177 = vshrl.u32 %v1176, 7
        %v1178 = vsub.s32 5, %v1177
        %v1179 = vrot.slane %v348, %v1178
        %v1180 = vlaneseq
        %v1181 = vshrl.u32 %v1180, 7
        %v1182 = vsub.s32 5, %v1181
        %v1183 = vrot.slane %v349, %v1182
        %v1184 = vadd.f32 %v1172, %v1179
        %v1185 = vadd.f32 %v1173, %v1183
        %v1186 = vadd.f32 %v1174, %v1179
        %v1187 = vadd.f32 %v1175, %v1183
        %vm1188 = vcmp.ge.f32.partialorder %v1184, 0.0
        %vm1189 = vcmp.ge.f32.partialorder %v1185, 0.0
        %vm1190 = vcmp.ge.f32.partialorder %v1186, 0.0
        %vm1191 = vcmp.ge.f32.partialorder %v1187, 0.0
        %v1192 = vlaneseq
        %v1193 = vshrl.u32 %v1192, 7
        %v1194 = vsub.s32 6, %v1193
        %v1195 = vrot.slane %v348, %v1194
        %v1196 = vlaneseq
        %v1197 = vshrl.u32 %v1196, 7
        %v1198 = vsub.s32 6, %v1197
        %v1199 = vrot.slane %v349, %v1198
        %v1200 = vmul.f32 %v1184, %v1195
        %v1201 = vmul.f32 %v1185, %v1199
        %v1202 = vmul.f32 %v1186, %v1195
        %v1203 = vmul.f32 %v1187, %v1199
        %v1204 = vsel %vm1188, %v1184, %v1200
        %v1205 = vsel %vm1189, %v1185, %v1201
        %v1206 = vsel %vm1190, %v1186, %v1202
        %v1207 = vsel %vm1191, %v1187, %v1203
        %v1208 = vpack.c.bf16 %v1206, %v1204
        %v1209 = vpack.c.bf16 %v1207, %v1205
        %v1210 = vld [vmem:[#allocation10] sm:$0xff]
        %v1211 = vld [vmem:[#allocation10 + $0x8] sm:$0xff]
        %v1212 = vld [vmem:[#allocation10 + $0x10] sm:$0xff]
        %v1213 = vld [vmem:[#allocation10 + $0x18] sm:$0xff]
        %v1214 = vld [vmem:[#allocation10 + $0x20] sm:$0xff]
        %v1215 = vld [vmem:[#allocation10 + $0x28] sm:$0xff]
        %v1216 = vld [vmem:[#allocation10 + $0x30] sm:$0xff]
        %v1217 = vld [vmem:[#allocation10 + $0x38] sm:$0xff]
        %v1218 = vld [vmem:[#allocation10 + $0x40] sm:$0xff]
        %v1219 = vld [vmem:[#allocation10 + $0x48] sm:$0xff]
        %v1220 = vld [vmem:[#allocation10 + $0x50] sm:$0xff]
        %v1221 = vld [vmem:[#allocation10 + $0x58] sm:$0xff]
        %v1222 = vld [vmem:[#allocation10 + $0x60] sm:$0xff]
        %v1223 = vld [vmem:[#allocation10 + $0x68] sm:$0xff]
        %v1224 = vld [vmem:[#allocation10 + $0x70] sm:$0xff]
        %v1225 = vld [vmem:[#allocation10 + $0x78] sm:$0xff]
        %v1226 = vld [vmem:[#allocation10 + $0x80] sm:$0xff]
        %v1227 = vld [vmem:[#allocation10 + $0x88] sm:$0xff]
        %v1228 = vld [vmem:[#allocation10 + $0x90] sm:$0xff]
        %v1229 = vld [vmem:[#allocation10 + $0x98] sm:$0xff]
        %v1230 = vld [vmem:[#allocation10 + $0xa0] sm:$0xff]
        %v1231 = vld [vmem:[#allocation10 + $0xa8] sm:$0xff]
        %v1232 = vld [vmem:[#allocation10 + $0xb0] sm:$0xff]
        %v1233 = vld [vmem:[#allocation10 + $0xb8] sm:$0xff]
        %v1234 = vld [vmem:[#allocation10 + $0xc0] sm:$0xff]
        %v1235 = vld [vmem:[#allocation10 + $0xc8] sm:$0xff]
        %v1236 = vld [vmem:[#allocation10 + $0xd0] sm:$0xff]
        %v1237 = vld [vmem:[#allocation10 + $0xd8] sm:$0xff]
        %v1238 = vld [vmem:[#allocation10 + $0xe0] sm:$0xff]
        %v1239 = vld [vmem:[#allocation10 + $0xe8] sm:$0xff]
        %v1240 = vld [vmem:[#allocation10 + $0xf0] sm:$0xff]
        %v1241 = vld [vmem:[#allocation10 + $0xf8] sm:$0xff]
        %v1242 = vlaneseq
        %v1243 = vshrl.u32 %v1242, 7
        %v1244 = vsub.s32 7, %v1243
        %v1245 = vrot.slane %v348, %v1244
        %v1246 = vlaneseq
        %v1247 = vshrl.u32 %v1246, 7
        %v1248 = vsub.s32 7, %v1247
        %v1249 = vrot.slane %v349, %v1248
        %v1282 = vunpack.c.l.b16 %v1210
        %v1283 = vunpack.c.h.b16 %v1210
        %v1284 = vunpack.c.l.b16 %v1211
        %v1285 = vunpack.c.h.b16 %v1211
        %v1286 = vunpack.c.l.b16 %v1212
        %v1287 = vunpack.c.h.b16 %v1212
        %v1288 = vunpack.c.l.b16 %v1213
        %v1289 = vunpack.c.h.b16 %v1213
        %v1290 = vunpack.c.l.b16 %v1214
        %v1291 = vunpack.c.h.b16 %v1214
        %v1292 = vunpack.c.l.b16 %v1215
        %v1293 = vunpack.c.h.b16 %v1215
        %v1294 = vunpack.c.l.b16 %v1216
        %v1295 = vunpack.c.h.b16 %v1216
        %v1296 = vunpack.c.l.b16 %v1217
        %v1297 = vunpack.c.h.b16 %v1217
        %v1298 = vunpack.c.l.b16 %v1218
        %v1299 = vunpack.c.h.b16 %v1218
        %v1300 = vunpack.c.l.b16 %v1219
        %v1301 = vunpack.c.h.b16 %v1219
        %v1302 = vunpack.c.l.b16 %v1220
        %v1303 = vunpack.c.h.b16 %v1220
        %v1304 = vunpack.c.l.b16 %v1221
        %v1305 = vunpack.c.h.b16 %v1221
        %v1306 = vunpack.c.l.b16 %v1222
        %v1307 = vunpack.c.h.b16 %v1222
        %v1308 = vunpack.c.l.b16 %v1223
        %v1309 = vunpack.c.h.b16 %v1223
        %v1310 = vunpack.c.l.b16 %v1224
        %v1311 = vunpack.c.h.b16 %v1224
        %v1312 = vunpack.c.l.b16 %v1225
        %v1313 = vunpack.c.h.b16 %v1225
        %v1314 = vunpack.c.l.b16 %v1226
        %v1315 = vunpack.c.h.b16 %v1226
        %v1316 = vunpack.c.l.b16 %v1227
        %v1317 = vunpack.c.h.b16 %v1227
        %v1318 = vunpack.c.l.b16 %v1228
        %v1319 = vunpack.c.h.b16 %v1228
        %v1320 = vunpack.c.l.b16 %v1229
        %v1321 = vunpack.c.h.b16 %v1229
        %v1322 = vunpack.c.l.b16 %v1230
        %v1323 = vunpack.c.h.b16 %v1230
        %v1324 = vunpack.c.l.b16 %v1231
        %v1325 = vunpack.c.h.b16 %v1231
        %v1326 = vunpack.c.l.b16 %v1232
        %v1327 = vunpack.c.h.b16 %v1232
        %v1328 = vunpack.c.l.b16 %v1233
        %v1329 = vunpack.c.h.b16 %v1233
        %v1330 = vunpack.c.l.b16 %v1234
        %v1331 = vunpack.c.h.b16 %v1234
        %v1332 = vunpack.c.l.b16 %v1235
        %v1333 = vunpack.c.h.b16 %v1235
        %v1334 = vunpack.c.l.b16 %v1236
        %v1335 = vunpack.c.h.b16 %v1236
        %v1336 = vunpack.c.l.b16 %v1237
        %v1337 = vunpack.c.h.b16 %v1237
        %v1338 = vunpack.c.l.b16 %v1238
        %v1339 = vunpack.c.h.b16 %v1238
        %v1340 = vunpack.c.l.b16 %v1239
        %v1341 = vunpack.c.h.b16 %v1239
        %v1342 = vunpack.c.l.b16 %v1240
        %v1343 = vunpack.c.h.b16 %v1240
        %v1344 = vunpack.c.l.b16 %v1241
        %v1345 = vunpack.c.h.b16 %v1241
        %v1346 = vpack.c.b16 %v1284, %v1282
        %v1347 = vpack.c.b16 %v1285, %v1283
        %v1348 = vpack.c.b16 %v1288, %v1286
        %v1349 = vpack.c.b16 %v1289, %v1287
        %v1350 = vpack.c.b16 %v1292, %v1290
        %v1351 = vpack.c.b16 %v1293, %v1291
        %v1352 = vpack.c.b16 %v1296, %v1294
        %v1353 = vpack.c.b16 %v1297, %v1295
        %v1354 = vpack.c.b16 %v1300, %v1298
        %v1355 = vpack.c.b16 %v1301, %v1299
        %v1356 = vpack.c.b16 %v1304, %v1302
        %v1357 = vpack.c.b16 %v1305, %v1303
        %v1358 = vpack.c.b16 %v1308, %v1306
        %v1359 = vpack.c.b16 %v1309, %v1307
        %v1360 = vpack.c.b16 %v1312, %v1310
        %v1361 = vpack.c.b16 %v1313, %v1311
        %v1362 = vpack.c.b16 %v1316, %v1314
        %v1363 = vpack.c.b16 %v1317, %v1315
        %v1364 = vpack.c.b16 %v1320, %v1318
        %v1365 = vpack.c.b16 %v1321, %v1319
        %v1366 = vpack.c.b16 %v1324, %v1322
        %v1367 = vpack.c.b16 %v1325, %v1323
        %v1368 = vpack.c.b16 %v1328, %v1326
        %v1369 = vpack.c.b16 %v1329, %v1327
        %v1370 = vpack.c.b16 %v1332, %v1330
        %v1371 = vpack.c.b16 %v1333, %v1331
        %v1372 = vpack.c.b16 %v1336, %v1334
        %v1373 = vpack.c.b16 %v1337, %v1335
        %v1374 = vpack.c.b16 %v1340, %v1338
        %v1375 = vpack.c.b16 %v1341, %v1339
        %v1376 = vpack.c.b16 %v1344, %v1342
        %v1377 = vpack.c.b16 %v1345, %v1343
        %1410 = vmatprep.subr.bf16.mxu0 %v1347
        %1411 = vmatpush1.bf16.msra.mxu0 %v1346
        %1412 = vmatprep.subr.bf16.mxu0 %v1349
        %1413 = vmatpush1.bf16.msra.mxu0 %v1348
        %1414 = vmatprep.subr.bf16.mxu0 %v1351
        %1415 = vmatpush1.bf16.msra.mxu0 %v1350
        %1416 = vmatprep.subr.bf16.mxu0 %v1353
        %1417 = vmatpush1.bf16.msra.mxu0 %v1352
        %1418 = vmatprep.subr.bf16.mxu0 %v1355
        %1419 = vmatpush1.bf16.msra.mxu0 %v1354
        %1420 = vmatprep.subr.bf16.mxu0 %v1357
        %1421 = vmatpush1.bf16.msra.mxu0 %v1356
        %1422 = vmatprep.subr.bf16.mxu0 %v1359
        %1423 = vmatpush1.bf16.msra.mxu0 %v1358
        %1424 = vmatprep.subr.bf16.mxu0 %v1361
        %1425 = vmatpush1.bf16.msra.mxu0 %v1360
        %1426 = vmatprep.subr.bf16.mxu0 %v1363
        %1427 = vmatpush1.bf16.msra.mxu0 %v1362
        %1428 = vmatprep.subr.bf16.mxu0 %v1365
        %1429 = vmatpush1.bf16.msra.mxu0 %v1364
        %1430 = vmatprep.subr.bf16.mxu0 %v1367
        %1431 = vmatpush1.bf16.msra.mxu0 %v1366
        %1432 = vmatprep.subr.bf16.mxu0 %v1369
        %1433 = vmatpush1.bf16.msra.mxu0 %v1368
        %1434 = vmatprep.subr.bf16.mxu0 %v1371
        %1435 = vmatpush1.bf16.msra.mxu0 %v1370
        %1436 = vmatprep.subr.bf16.mxu0 %v1373
        %1437 = vmatpush1.bf16.msra.mxu0 %v1372
        %1438 = vmatprep.subr.bf16.mxu0 %v1375
        %1439 = vmatpush1.bf16.msra.mxu0 %v1374
        %1440 = vmatprep.subr.bf16.mxu0 %v1377
        %1441 = vmatpush1.bf16.msra.mxu0 %v1376
        %1442 = vmatprep.mubr.bf16.mxu0 %v1209
        %1443 = vmatmul.mubr.bf16.gmra.mrb[0].mxu0 %v1208
        %v1444 = vpop.f32.mrb[0].mxu0
        %v1445 = vadd.f32 %v1245, %v1444
        %v1446 = vpop.f32.mrb[0].mxu0
        %v1447 = vadd.f32 %v1249, %v1446
        %v1448 = vpop.f32.mrb[0].mxu0
        %v1449 = vadd.f32 %v1245, %v1448
        %v1450 = vpop.f32.mrb[0].mxu0
        %v1451 = vadd.f32 %v1249, %v1450
        %1452 = vdwg.mxu0
        %v1453 = vadd.f32 %v1445, %v344
        %v1454 = vadd.f32 %v1447, %v345
        %v1455 = vadd.f32 %v1449, %v346
        %v1456 = vadd.f32 %v1451, %v347
        %v1457 = vlaneseq
        %v1458 = vshrl.u32 %v1457, 7
        %v1459 = vsub.s32 0, %v1458
        %v1460 = vrot.slane %v350, %v1459
        %v1461 = vlaneseq
        %v1462 = vshrl.u32 %v1461, 7
        %v1463 = vsub.s32 0, %v1462
        %v1464 = vrot.slane %v351, %v1463
        %v1465 = vmul.f32 %v1453, %v1460
        %v1466 = vmul.f32 %v1454, %v1464
        %v1467 = vmul.f32 %v1455, %v1460
        %v1468 = vmul.f32 %v1456, %v1464
        %v1469 = vlaneseq
        %v1470 = vshrl.u32 %v1469, 7
        %v1471 = vsub.s32 1, %v1470
        %v1472 = vrot.slane %v350, %v1471
        %v1473 = vlaneseq
        %v1474 = vshrl.u32 %v1473, 7
        %v1475 = vsub.s32 1, %v1474
        %v1476 = vrot.slane %v351, %v1475
        %v1477 = vadd.f32 %v1465, %v1472
        %v1478 = vadd.f32 %v1466, %v1476
        %v1479 = vadd.f32 %v1467, %v1472
        %v1480 = vadd.f32 %v1468, %v1476
        %vm1481 = vcmp.ge.f32.partialorder %v1477, 0.0
        %vm1482 = vcmp.ge.f32.partialorder %v1478, 0.0
        %vm1483 = vcmp.ge.f32.partialorder %v1479, 0.0
        %vm1484 = vcmp.ge.f32.partialorder %v1480, 0.0
        %v1485 = vlaneseq
        %v1486 = vshrl.u32 %v1485, 7
        %v1487 = vsub.s32 2, %v1486
        %v1488 = vrot.slane %v350, %v1487
        %v1489 = vlaneseq
        %v1490 = vshrl.u32 %v1489, 7
        %v1491 = vsub.s32 2, %v1490
        %v1492 = vrot.slane %v351, %v1491
        %v1493 = vmul.f32 %v1477, %v1488
        %v1494 = vmul.f32 %v1478, %v1492
        %v1495 = vmul.f32 %v1479, %v1488
        %v1496 = vmul.f32 %v1480, %v1492
        %v1497 = vsel %vm1481, %v1477, %v1493
        %v1498 = vsel %vm1482, %v1478, %v1494
        %v1499 = vsel %vm1483, %v1479, %v1495
        %v1500 = vsel %vm1484, %v1480, %v1496
        %1501 = vst [vmem:[%s342] sm:$0xff] %v1497
        %1502 = vst [vmem:[%s342 + $0x8] sm:$0xff] %v1498
        %1503 = vst [vmem:[%s342 + $0x10] sm:$0xff] %v1499
        %1504 = vst [vmem:[%s342 + $0x18] sm:$0xff] %v1500
        %s1505 = sand.u32 %s165, 1
        %s1506 = scalar_lea.sflag [#allocation4], %s1505
        %s1507 = sand.u32 %s165, 1
        %s1508 = smul.addr %s1507, 32
        %s1509 = scalar_lea.vmem [#allocation13], %s1508
        // Predicated region
        $region69: #{tpu_custom_call.1} parent=43 // pred_check
          %p1510 = pneg %p175
        $region70: #{tpu_custom_call.1} parent=43 // pred_check_branch
          %1512 = sbr.rel (%p1510) target = $region72
        $region71: #{tpu_custom_call.1} parent=43 // pred_region
          %s1514 = ssub.s32 512, 512
          %1515 = vsyncadd %s1506, %s1514
          %s1516 = smul.addr %s26, 4
          %s1517 = smul.addr %s1516, 128
          %s1518 = scalar_lea.hbm %s6, %s1517
          %s1519 = sshll.u32 %s1509, 4
          %s1520 = int_to_ptr.vmem [resolvable:$true] %s1519
          %1525 = dma.vmem_to_hbm [thread:$0]  %s1520, 512, %s1518, %s1506, 256, 256, 16
        $region72: #{tpu_custom_call.1} parent=43 // pred_fallthru
          _
      $region44: #{tpu_custom_call.1} parent=5 // pred_fallthru
        _
      %p1526 = scmp.le.s32.totalorder 2, %s21
      // Predicated region
      $region73: #{tpu_custom_call.1} parent=5 // pred_check
        %p1527 = pneg %p1526
      $region74: #{tpu_custom_call.1} parent=5 // pred_check_branch
        %1529 = sbr.rel (%p1527) target = $region76
      $region75: #{tpu_custom_call.1} parent=5 // pred_region
        %s1530 = ssub.s32 %s21, 2
        // Predicated region
        $region77: #{tpu_custom_call.1} parent=75 // pred_check
          %p1531 = pneg %p181
        $region78: #{tpu_custom_call.1} parent=75 // pred_check_branch
          %1533 = sbr.rel (%p1531) target = $region80
        $region79: #{tpu_custom_call.1} parent=75 // pred_region
          %s1534 = sand.u32 %s166, 1
          %s1535 = scalar_lea.sflag [#allocation4], %s1534
          %s1536 = sand.u32 %s166, 1
          %s1537 = smul.addr %s1536, 32
          %s1538 = scalar_lea.vmem [#allocation13], %s1537
          %1539 = dma.done %s1535, 512
        $region80: #{tpu_custom_call.1} parent=75 // pred_fallthru
          _
      $region76: #{tpu_custom_call.1} parent=5 // pred_fallthru
        _
    $region6: #{tpu_custom_call.1} parent=1 // loop_footer
      %s25 = sadd.s32 1, %s21
    $region7: #{tpu_custom_call.1} parent=1 // loop_footer_branch
      %20 = sbr.rel target = $region3
    $region8: #{tpu_custom_call.1} parent=1 // loop_exit
      _
    %1540 = vsyncpa [#allocation3], 1
    %s1541 = scalar_lea.sflag [#allocation3], 1
    %1542 = vsyncpa %s1541, 1
    %1543 = vsyncpa [#allocation6], 1
    %1544 = vsyncpa [#allocation9], 1
    %1545 = vsyncpa [#allocation12], 1
    %1546 = vsyncpa [#allocation4], 1
    %s1547 = scalar_lea.sflag [#allocation4], 1
    %1548 = vsyncpa %s1547, 1

</llo_original>
